<compile_context>
chip_gen: v7x
topology: tpu7x:2x2x1
jax: 0.10.0
libtpu: 0.0.40
codegen_flags: <defaults>
</compile_context>

<pallas_src>
import functools
import math

import jax
import jax.numpy as jnp
from jax import lax
from jax.experimental import pallas as pl
from jax.experimental.pallas import tpu as pltpu

_MIB = 1 << 20


def _round_up(x, m):
    return ((x + m - 1) // m) * m


# ----------------------------------------------------------------------------
# Generation-gated VMEM budgeting (safe fallbacks if probing fails).
# ----------------------------------------------------------------------------
def _tpu_kind_and_vmem():
    kind = ""
    try:
        kind = jax.devices()[0].device_kind.lower()
    except Exception:
        pass
    cap = None
    try:
        info = pltpu.get_tpu_info()
        cap = int(getattr(info, "vmem_capacity_bytes", 0)) or None
    except Exception:
        cap = None
    if cap is None:
        if "v7" in kind:
            cap = 64 * _MIB
        elif ("v6" in kind) or ("v5" in kind) or ("v4" in kind):
            cap = 128 * _MIB
        else:
            cap = 64 * _MIB            # conservative default for unknown parts
    if "v7" in kind:
        cap = min(cap, 64 * _MIB)      # per-TensorCore VMEM on v7x
    return kind, cap


def _vmem_budget_and_limit():
    _, cap = _tpu_kind_and_vmem()
    budget = min(40 * _MIB, max(8 * _MIB, (3 * cap) // 10))    # ~30% of VMEM
    limit = min(96 * _MIB, max(24 * _MIB, (13 * cap) // 20))   # ~65% of VMEM
    return budget, limit


# ----------------------------------------------------------------------------
# Pallas kernel: per (batch-group, i-tile, j-tile) fused
#   relu(a_i + c_j) -> relu(fc2) -> fc3
# with features on sublanes and the j axis lane-dense throughout.
# ----------------------------------------------------------------------------
def _reinsertion_mlp_kernel(a_ref, c_ref, w2_ref, b2_ref, w3_ref, b3_ref,
                            out_ref, *, slab):
    """a_ref : (TB, TI, F)  f32  row fc1 partials  (cp_i @ W1[:2H])
       c_ref : (TB, F, TJ)  f32  col fc1 partials + b1, pre-transposed
       w2_ref: (E, F)       bf16/f32  fc2 weight (transposed)
       b2_ref, w3_ref: (E, 1) f32 ; b3_ref: (1, 1) f32
       out_ref: (TB, TI, TJ) f32
    """
    tb, ti, F = a_ref.shape
    tj = c_ref.shape[2]
    E = w2_ref.shape[0]
    mxu_dtype = w2_ref.dtype
    n_slabs = ti // slab

    # Hoisted loads / broadcasts (JAX does not CSE broadcast_in_dim in loops).
    w2b = jnp.broadcast_to(w2_ref[...][None, :, :], (slab, E, F))  # (slab,E,F)
    b2 = b2_ref[...][None, :, :]                                   # (1,E,1) f32
    w3 = w3_ref[...][None, :, :]                                   # (1,E,1) f32
    b3 = b3_ref[0, 0]

    def batch_body(b, carry):
        # Column features for this j-tile; lanes = TJ (dense), sublanes = F.
        cb = c_ref[b].astype(jnp.float32)                          # (F, TJ)

        def slab_body(s, carry2):
            r0 = pl.multiple_of(s * slab, slab)
            a_sl = a_ref[b, pl.ds(r0, slab), :].astype(jnp.float32)    # (slab,F)
            # Fused broadcast-concat + fc1 bias + ReLU (f32, fully lane-dense).
            h1 = jnp.maximum(a_sl[:, :, None] + cb[None, :, :], 0.0)   # (slab,F,TJ)
            h1 = h1.astype(mxu_dtype)
            # fc2 as a batched MXU matmul: (E,F) @ (F,TJ) per slab row.
            h2 = jnp.einsum('bef,bfj->bej', w2b, h1,
                            preferred_element_type=jnp.float32)        # (slab,E,TJ)
            h2 = jnp.maximum(h2 + b2, 0.0)
            # fc3: weighted sum over E on sublanes -> (slab, TJ) stays
            # lane-dense, no relayout, unmasked vst stores.
            o = jnp.sum(h2 * w3, axis=1) + b3                           # (slab,TJ)
            out_ref[b, pl.ds(r0, slab), :] = o.astype(out_ref.dtype)
            return carry2

        return lax.fori_loop(0, n_slabs, slab_body, carry)

    lax.fori_loop(0, tb, batch_body, 0)


def _pair_mlp_pallas(a, c, N, *, W2, b2, W3, b3, matmul_dtype=jnp.bfloat16):
    """a, c: (B, N, F) hoisted fc1 partials (c already includes b1)."""
    B, _, F = a.shape
    E = W2.shape[1]
    io_b = 4
    mxu_b = jnp.dtype(matmul_dtype).itemsize

    budget, limit = _vmem_budget_and_limit()

    # ---- j axis (lanes): pad to a multiple of 128, tile with a 128-multiple
    #      that divides the padded width (lane-dense, unmasked stores). ------
    Nj = _round_up(N, 128)
    tj = 128
    for cand in (512, 384, 256, 128):
        if cand <= Nj and Nj % cand == 0:
            tj = cand
            break

    # Row-slab size: bounds the f32 h1/h2 live range to ~8K pixels per fc2
    # matmul so intermediates never round-trip VMEM at full tile size.
    slab_t = max(8, min(64, (8192 // tj) // 8 * 8))

    def est_bytes(tb_, ti_, slab_):
        # Double-buffered DMA blocks scale with tb; the compute scratch is
        # slab-sized and reused across b / slabs (fori_loop bounds live range).
        blocks = 2 * tb_ * (ti_ * F * io_b + F * tj * io_b + ti_ * tj * 4)
        slab_scr = slab_ * tj * (F * 4 + F * mxu_b + 2 * E * 4 + 8)
        weights = slab_ * E * F * mxu_b + 4 * E * F * mxu_b + 64 * E
        return blocks + slab_scr + weights + _MIB          # 1 MiB slack

    # ---- i axis (sublanes): largest multiple-of-8 tile within budget. ------
    Nr8 = _round_up(N, 8)
    ti = 8
    for cand in (256, 128, 64, 32, 16, 8):
        if cand <= Nr8 and est_bytes(1, cand, min(slab_t, cand)) <= budget:
            ti = cand
            break
    slab = min(slab_t, ti)
    Ni = _round_up(N, ti)

    # ---- batch grouping: amortize ~0.35us/step for small graphs, but keep
    #      >= a few parallel grid steps so both v7x TensorCores stay busy. ----
    n_ij = (Ni // ti) * (Nj // tj)
    min_steps = min(4, B * n_ij)
    tb = 1
    for d in range(min(B, 8), 0, -1):
        if B % d == 0 and est_bytes(d, ti, slab) <= budget \
                and (B // d) * n_ij >= min_steps:
            tb = d
            break

    # ---- pad (zero rows/cols produce finite garbage that is sliced off). ---
    a_p = a if Ni == N else jnp.pad(a, ((0, 0), (0, Ni - N), (0, 0)))
    c_p = c if Nj == N else jnp.pad(c, ((0, 0), (0, Nj - N), (0, 0)))
    a_p = a_p.astype(jnp.float32)
    cT_p = jnp.transpose(c_p, (0, 2, 1)).astype(jnp.float32)       # (B, F, Nj)

    w2T = W2.T.astype(matmul_dtype)                                # (E, F)
    b2c = b2.reshape(E, 1).astype(jnp.float32)
    w3c = W3.reshape(E, 1).astype(jnp.float32)
    b3s = b3.reshape(1, 1).astype(jnp.float32)

    kernel = functools.partial(_reinsertion_mlp_kernel, slab=slab)

    out_padded = pl.pallas_call(
        kernel,
        out_shape=jax.ShapeDtypeStruct((B, Ni, Nj), jnp.float32),
        grid_spec=pltpu.PrefetchScalarGridSpec(
            num_scalar_prefetch=0,
            grid=(B // tb, Ni // ti, Nj // tj),
            in_specs=[
                pl.BlockSpec((tb, ti, F), lambda bb, it, jt: (bb, it, 0)),   # a
                pl.BlockSpec((tb, F, tj), lambda bb, it, jt: (bb, 0, jt)),   # c^T
                pl.BlockSpec((E, F), lambda bb, it, jt: (0, 0)),             # W2^T
                pl.BlockSpec((E, 1), lambda bb, it, jt: (0, 0)),             # b2
                pl.BlockSpec((E, 1), lambda bb, it, jt: (0, 0)),             # W3
                pl.BlockSpec((1, 1), lambda bb, it, jt: (0, 0)),             # b3
            ],
            out_specs=pl.BlockSpec((tb, ti, tj),
                                   lambda bb, it, jt: (bb, it, jt)),
        ),
        compiler_params=pltpu.CompilerParams(
            dimension_semantics=("parallel", "parallel", "parallel"),
            vmem_limit_bytes=limit,
        ),
    )(a_p, cT_p, w2T, b2c, w3c, b3s)

    return out_padded[:, :N, :N]


# ----------------------------------------------------------------------------
# Module forward (plain-JAX glue for the tiny gathers / QK^T projections; the
# O(B*N^2) fused MLP runs in the Pallas kernel).
# ----------------------------------------------------------------------------
def node_pair_reinsertion_decoder(params, h_hat, pos_pickup, pos_delivery,
                                  solution, matmul_dtype=jnp.bfloat16):
    B, N, D = h_hat.shape
    H = params['n_heads']
    hp = jax.lax.Precision.HIGHEST

    arange = jnp.arange(B)
    h_pickup = h_hat[arange, pos_pickup]                           # (B, D)
    h_delivery = h_hat[arange, pos_delivery]                       # (B, D)
    # h_hat.gather(1, solution.expand(...)) -> h_hat[b, solution[b, k], :]
    h_K = jnp.take_along_axis(h_hat, solution[:, :, None], axis=1)   # (B, N, D)

    def compat(q_vec, keys, Wq, Wk):
        # MultiHeadAttention with v=None, with_norm=False: unscaled Q K^T.
        Q = jnp.einsum('bd,hde->bhe', q_vec, Wq, precision=hp)
        K = jnp.einsum('bnd,hde->bhne', keys, Wk, precision=hp)
        return jnp.einsum('bhe,bhne->bnh', Q, K, precision=hp)      # (B, N, H)

    cpp = compat(h_pickup,   h_hat, params['Wq1'], params['Wk1'])   # pickup-pre
    cpo = compat(h_pickup,   h_K,   params['Wq2'], params['Wk2'])   # pickup-post
    cdp = compat(h_delivery, h_hat, params['Wq1'], params['Wk1'])   # delivery-pre
    cdo = compat(h_delivery, h_K,   params['Wq2'], params['Wk2'])   # delivery-post

    cp = jnp.concatenate([cpp, cpo], axis=-1)                       # (B, N, 2H) rows
    cd = jnp.concatenate([cdp, cdo], axis=-1)                       # (B, N, 2H) cols

    # Hoisted fc1 split (review): fc1([cp_i, cd_j]) = cp_i@W1[:2H] + cd_j@W1[2H:] + b1.
    twoH = 2 * H
    W1 = params['W1']
    a = jnp.einsum('bnk,kf->bnf', cp, W1[:twoH], precision=hp)      # (B, N, F)
    c = jnp.einsum('bnk,kf->bnf', cd, W1[twoH:], precision=hp) + params['b1']

    return _pair_mlp_pallas(a, c, N,
                            W2=params['W2'], b2=params['b2'],
                            W3=params['W3'], b3=params['b3'],
                            matmul_dtype=matmul_dtype)


# ----------------------------------------------------------------------------
# Pure-JAX reference (mirrors the PyTorch control flow) for validation.
# ----------------------------------------------------------------------------
def reference(params, h_hat, pos_pickup, pos_delivery, solution):
    hp = jax.lax.Precision.HIGHEST
    B, N, D = h_hat.shape
    H = params['n_heads']
    arange = jnp.arange(B)
    h_pickup = h_hat[arange, pos_pickup][:, None, :]                # (B, 1, D)
    h_delivery = h_hat[arange, pos_delivery][:, None, :]            # (B, 1, D)
    h_K = jnp.take_along_axis(h_hat, solution[:, :, None], axis=1)

    def mha_compat(q, k, Wq, Wk):
        Q = jnp.einsum('bqd,hde->hbqe', q, Wq, precision=hp)
        K = jnp.einsum('bkd,hde->hbke', k, Wk, precision=hp)
        return jnp.einsum('hbqe,hbke->hbqk', Q, K, precision=hp)    # (H, B, 1, N)

    shp = (B, N, N, H)

    def perm_p(x):   # -> (B, N, 1, H) then broadcast
        return jnp.broadcast_to(
            jnp.transpose(x, (1, 2, 3, 0)).reshape(B, -1, 1, H), shp)

    def perm_d(x):   # -> (B, 1, N, H) then broadcast
        return jnp.broadcast_to(
            jnp.transpose(x, (1, 2, 3, 0)).reshape(B, 1, -1, H), shp)

    cpp = perm_p(mha_compat(h_pickup,   h_hat, params['Wq1'], params['Wk1']))
    cpo = perm_p(mha_compat(h_pickup,   h_K,   params['Wq2'], params['Wk2']))
    cdp = perm_d(mha_compat(h_delivery, h_hat, params['Wq1'], params['Wk1']))
    cdo = perm_d(mha_compat(h_delivery, h_K,   params['Wq2'], params['Wk2']))

    x = jnp.concatenate([cpp, cpo, cdp, cdo], axis=-1)              # (B, N, N, 4H)
    h1 = jax.nn.relu(jnp.einsum('bijk,kf->bijf', x, params['W1'],
                                precision=hp) + params['b1'])       # dropout p=0
    h2 = jax.nn.relu(jnp.einsum('bijf,fe->bije', h1, params['W2'],
                                precision=hp) + params['b2'])
    out = jnp.einsum('bije,eo->bijo', h2, params['W3'],
                     precision=hp)[..., 0] + params['b3']           # (B, N, N)
    return jnp.squeeze(out)


# ----------------------------------------------------------------------------
# Deterministic synthetic parameters (shapes follow the module __init__).
# ----------------------------------------------------------------------------
def init_params(key, n_heads, input_dim, ff_dim=32, emb_dim=32):
    H, D = n_heads, input_dim
    ks = jax.random.split(key, 10)

    def u(k, shape, stdv):
        return jax.random.uniform(k, shape, jnp.float32, -stdv, stdv)

    return {
        'n_heads': H,
        # MultiHeadAttention (v=None): only W_query / W_key, each (H, D, D).
        'Wq1': u(ks[0], (H, D, D), 1.0 / math.sqrt(D)),
        'Wk1': u(ks[1], (H, D, D), 1.0 / math.sqrt(D)),
        'Wq2': u(ks[2], (H, D, D), 1.0 / math.sqrt(D)),
        'Wk2': u(ks[3], (H, D, D), 1.0 / math.sqrt(D)),
        # MLP(4H -> 32 -> 32 -> 1), stored as (in, out) matrices.
        'W1': u(ks[4], (4 * H, ff_dim), 1.0 / math.sqrt(4 * H)),
        'b1': u(ks[5], (ff_dim,), 1.0 / math.sqrt(ff_dim)),
        'W2': u(ks[6], (ff_dim, emb_dim), 1.0 / math.sqrt(ff_dim)),
        'b2': u(ks[7], (emb_dim,), 1.0 / math.sqrt(emb_dim)),
        'W3': u(ks[8], (emb_dim, 1), 1.0 / math.sqrt(emb_dim)),
        'b3': u(ks[9], (1,), 1.0),
    }


if __name__ == "__main__":
    B, N, D, H = 2, 8, 16, 4   # batch, graph_size+1, input_dim, n_heads

    key = jax.random.PRNGKey(0)
    kp, kh, kpu, kde, kso = jax.random.split(key, 5)
    params = init_params(kp, H, D)

    h_hat = jax.random.normal(kh, (B, N, D), jnp.float32)
    pos_pickup = jax.random.randint(kpu, (B,), 0, N)
    pos_delivery = jax.random.randint(kde, (B,), 0, N)
    solution = jax.random.randint(kso, (B, N), 0, N)

    ref = reference(params, h_hat, pos_pickup, pos_delivery, solution)

    # Exact-precision path (all-f32 kernel): strict correctness check.
    out_f32 = node_pair_reinsertion_decoder(params, h_hat, pos_pickup,
                                            pos_delivery, solution,
                                            matmul_dtype=jnp.float32)
    out_f32 = jax.block_until_ready(out_f32)
    assert out_f32.shape == (B, N, N), out_f32.shape
    assert jnp.allclose(out_f32, ref, atol=2e-3, rtol=2e-3), \
        float(jnp.max(jnp.abs(out_f32 - ref)))

    # Default fast path: bf16 fc2 MXU operands, f32 accumulation / elementwise.
    out_bf16 = node_pair_reinsertion_decoder(params, h_hat, pos_pickup,
                                             pos_delivery, solution)
    out_bf16 = jax.block_until_ready(out_bf16)
    assert out_bf16.shape == (B, N, N), out_bf16.shape
    assert bool(jnp.all(jnp.isfinite(out_bf16)))
    assert float(jnp.max(jnp.abs(out_bf16 - ref))) < 0.5

    print("KERNEL_OK")
</pallas_src>

<mosaic_0001>
module attributes {stable_mosaic.version = 11 : i64} {
  func.func @_reinsertion_mlp_kernel(%arg0: i32, %arg1: i32, %arg2: i32, %arg3: memref<1x8x32xf32, #tpu.memory_space<vmem>>, %arg4: memref<1x32x128xf32, #tpu.memory_space<vmem>>, %arg5: memref<32x32xf32, #tpu.memory_space<vmem>>, %arg6: memref<32x1xf32, #tpu.memory_space<vmem>>, %arg7: memref<32x1xf32, #tpu.memory_space<vmem>>, %arg8: memref<1x1xf32, #tpu.memory_space<vmem>>, %arg9: memref<1x8x128xf32, #tpu.memory_space<vmem>>) attributes {dimension_semantics = [#tpu.dimension_semantics<parallel>, #tpu.dimension_semantics<parallel>, #tpu.dimension_semantics<parallel>], iteration_bounds = array<i64: 2, 1, 1>, scalar_prefetch = 0 : i64, scratch_operands = 0 : i64, tpu.core_type = #tpu.core_type<tc>, window_params = [{transform_indices = @transform_0, window_bounds = array<i64: 1, 8, 32>}, {transform_indices = @transform_1, window_bounds = array<i64: 1, 32, 128>}, {pipeline_mode = #tpu.pipeline_mode<synchronous>, transform_indices = @transform_2, window_bounds = array<i64: 32, 32>}, {pipeline_mode = #tpu.pipeline_mode<synchronous>, transform_indices = @transform_3, window_bounds = array<i64: 32, 1>}, {pipeline_mode = #tpu.pipeline_mode<synchronous>, transform_indices = @transform_4, window_bounds = array<i64: 32, 1>}, {pipeline_mode = #tpu.pipeline_mode<synchronous>, transform_indices = @transform_5, window_bounds = array<i64: 1, 1>}, {transform_indices = @transform_6, window_bounds = array<i64: 1, 8, 128>}]} {
    %c0 = arith.constant 0 : index
    %c0_0 = arith.constant 0 : index
    %0 = vector.load %arg5[%c0, %c0_0] : memref<32x32xf32, #tpu.memory_space<vmem>>, vector<32x32xf32>
    %1 = vector.shape_cast %0 : vector<32x32xf32> to vector<1x32x32xf32>
    %2 = vector.shape_cast %1 : vector<1x32x32xf32> to vector<1x32x32xf32>
    %3 = vector.broadcast %2 : vector<1x32x32xf32> to vector<8x32x32xf32>
    %c0_1 = arith.constant 0 : index
    %c0_2 = arith.constant 0 : index
    %4 = vector.load %arg6[%c0_1, %c0_2] : memref<32x1xf32, #tpu.memory_space<vmem>>, vector<32x1xf32>
    %5 = vector.shape_cast %4 : vector<32x1xf32> to vector<1x32x1xf32>
    %c0_3 = arith.constant 0 : index
    %c0_4 = arith.constant 0 : index
    %6 = vector.load %arg7[%c0_3, %c0_4] : memref<32x1xf32, #tpu.memory_space<vmem>>, vector<32x1xf32>
    %7 = vector.shape_cast %6 : vector<32x1xf32> to vector<1x32x1xf32>
    %c0_5 = arith.constant 0 : index
    %c0_6 = arith.constant 0 : index
    %8 = vector.load %arg8[%c0_5, %c0_6] : memref<1x1xf32, #tpu.memory_space<vmem>>, vector<1x1xf32>
    %9 = vector.extract %8[0, 0] : f32 from vector<1x1xf32>
    %c0_i32 = arith.constant 0 : i32
    %10 = arith.index_cast %c0_i32 : i32 to index
    %c0_7 = arith.constant 0 : index
    %c0_8 = arith.constant 0 : index
    %11 = vector.load %arg4[%10, %c0_7, %c0_8] : memref<1x32x128xf32, #tpu.memory_space<vmem>>, vector<1x32x128xf32>
    %12 = vector.shape_cast %11 : vector<1x32x128xf32> to vector<32x128xf32>
    %c0_i32_9 = arith.constant 0 : i32
    %c8_i32 = arith.constant 8 : i32
    %13 = arith.muli %c0_i32_9, %c8_i32 : i32
    %14 = tpu.assume_multiple %13, 8 : i32
    %15 = arith.index_cast %c0_i32 : i32 to index
    %16 = arith.index_cast %14 : i32 to index
    %c0_10 = arith.constant 0 : index
    %17 = vector.load %arg3[%15, %16, %c0_10] : memref<1x8x32xf32, #tpu.memory_space<vmem>>, vector<1x8x32xf32>
    %18 = vector.shape_cast %17 : vector<1x8x32xf32> to vector<8x32xf32>
    %19 = vector.shape_cast %18 : vector<8x32xf32> to vector<8x32x1xf32>
    %20 = vector.shape_cast %12 : vector<32x128xf32> to vector<1x32x128xf32>
    %21 = vector.broadcast %19 : vector<8x32x1xf32> to vector<8x32x128xf32>
    %22 = vector.broadcast %20 : vector<1x32x128xf32> to vector<8x32x128xf32>
    %23 = arith.addf %21, %22 : vector<8x32x128xf32>
    %cst = arith.constant 0.000000e+00 : f32
    %24 = vector.broadcast %cst : f32 to vector<8x32x128xf32>
    %25 = arith.maximumf %23, %24 : vector<8x32x128xf32>
    "tpu.trace_start"() <{level = 10 : i32, message = "bef,bfj->bej"}> : () -> ()
    %cst_11 = arith.constant dense<0.000000e+00> : vector<8x32x128xf32>
    %26 = tpu.matmul %3, %25, %cst_11 {dimension_numbers = #tpu.dot_dimension_numbers<[2], [1], [1], [2], [0, 0, 0, 1, 1, 2], [0], [0]>} : vector<8x32x32xf32>, vector<8x32x128xf32>, vector<8x32x128xf32> -> vector<8x32x128xf32>
    "tpu.trace_stop"() : () -> ()
    %27 = vector.broadcast %5 : vector<1x32x1xf32> to vector<8x32x128xf32>
    %28 = arith.addf %26, %27 : vector<8x32x128xf32>
    %cst_12 = arith.constant 0.000000e+00 : f32
    %29 = vector.broadcast %cst_12 : f32 to vector<8x32x128xf32>
    %30 = arith.maximumf %28, %29 : vector<8x32x128xf32>
    %31 = vector.broadcast %7 : vector<1x32x1xf32> to vector<8x32x128xf32>
    %32 = arith.mulf %30, %31 : vector<8x32x128xf32>
    %cst_13 = arith.constant dense<0.000000e+00> : vector<8x128xf32>
    %33 = vector.multi_reduction <add>, %32, %cst_13 [1] : vector<8x32x128xf32> to vector<8x128xf32>
    %34 = vector.broadcast %9 : f32 to vector<8x128xf32>
    %35 = arith.addf %33, %34 : vector<8x128xf32>
    %36 = arith.index_cast %c0_i32 : i32 to index
    %37 = arith.index_cast %14 : i32 to index
    %c0_14 = arith.constant 0 : index
    %38 = vector.load %arg9[%36, %37, %c0_14] : memref<1x8x128xf32, #tpu.memory_space<vmem>>, vector<1x8x128xf32>
    %39 = vector.shape_cast %38 : vector<1x8x128xf32> to vector<8x128xf32>
    %40 = vector.shape_cast %35 : vector<8x128xf32> to vector<1x8x128xf32>
    tpu.vector_store %arg9[%36, %37, %c0_14], %40 {strides = array<i32>} : memref<1x8x128xf32, #tpu.memory_space<vmem>>, vector<1x8x128xf32>,
    %c1_i32 = arith.constant 1 : i32
    %c1_i32_15 = arith.constant 1 : i32
    return
  }
  func.func @transform_0(%arg0: i32, %arg1: i32, %arg2: i32) -> (i32, i32, i32) {
    %c0_i32 = arith.constant 0 : i32
    %c0_i32_0 = arith.constant 0 : i32
    return %arg0, %arg1, %c0_i32 : i32, i32, i32
  }
  func.func @transform_1(%arg0: i32, %arg1: i32, %arg2: i32) -> (i32, i32, i32) {
    %c0_i32 = arith.constant 0 : i32
    %c0_i32_0 = arith.constant 0 : i32
    return %arg0, %c0_i32, %arg2 : i32, i32, i32
  }
  func.func @transform_2(%arg0: i32, %arg1: i32, %arg2: i32) -> (i32, i32) {
    %c0_i32 = arith.constant 0 : i32
    %c0_i32_0 = arith.constant 0 : i32
    %c0_i32_1 = arith.constant 0 : i32
    return %c0_i32, %c0_i32_0 : i32, i32
  }
  func.func @transform_3(%arg0: i32, %arg1: i32, %arg2: i32) -> (i32, i32) {
    %c0_i32 = arith.constant 0 : i32
    %c0_i32_0 = arith.constant 0 : i32
    %c0_i32_1 = arith.constant 0 : i32
    return %c0_i32, %c0_i32_0 : i32, i32
  }
  func.func @transform_4(%arg0: i32, %arg1: i32, %arg2: i32) -> (i32, i32) {
    %c0_i32 = arith.constant 0 : i32
    %c0_i32_0 = arith.constant 0 : i32
    %c0_i32_1 = arith.constant 0 : i32
    return %c0_i32, %c0_i32_0 : i32, i32
  }
  func.func @transform_5(%arg0: i32, %arg1: i32, %arg2: i32) -> (i32, i32) {
    %c0_i32 = arith.constant 0 : i32
    %c0_i32_0 = arith.constant 0 : i32
    %c0_i32_1 = arith.constant 0 : i32
    return %c0_i32, %c0_i32_0 : i32, i32
  }
  func.func @transform_6(%arg0: i32, %arg1: i32, %arg2: i32) -> (i32, i32, i32) {
    %c0_i32 = arith.constant 0 : i32
    return %arg0, %arg1, %arg2 : i32, i32, i32
  }
}

</mosaic_0001>

<llo_original>
// kernel: tpu_custom_call.1
$region0: #{tpu_custom_call.1}
  #allocation0 [shape = 'u32[]', space=smem, size = 0x4, offset = 0x4, fixed_abs, tag = 'smem constant byte address 0x4 - core index']
  #allocation1 [shape = 'u32[144,128]{1,0:T(1,128)}', space=vmem, size = 0x12000, scoped, tag = 'internal scratch']
  #allocation2 [shape = 'f32[1,1]{1,0:T(1,128)S(1)}', space=vmem, size = 0x200, scoped, tag = 'scoped memory for tpu_custom_call.1']
  %s0 = inlined_call_operand.hbm [shape: f32[2,8,32], index: 0, kind: input, shape index: {}]
  %s1 = inlined_call_operand.vmem [shape: f32[2,32,128], index: 1, kind: input, shape index: {}]
  %s2 = inlined_call_operand.hbm [shape: f32[32,32], index: 2, kind: input, shape index: {}]
  %s3 = inlined_call_operand.vmem [shape: f32[32,1], index: 3, kind: input, shape index: {}]
  %s4 = inlined_call_operand.vmem [shape: f32[32,1], index: 4, kind: input, shape index: {}]
  %s5 = inlined_call_operand.<no memory space> [shape: f32[1,1], index: 5, kind: input, shape index: {}]
  %s6 = inlined_call_operand.hbm [shape: f32[2,8,128], index: 6, kind: output, shape index: {}]
  %s7 = sld [smem:[#allocation0]]
  $region65: #{tpu_custom_call.1} parent=0
    _
  %s9 = ssub.s32 1, %s7
  %s10 = scalar_select 0, %s9, %s7
  %v11 = vstv %s5
  %12 = vst [vmem:[#allocation2] sm:$0x1] %v11
  $region1: #{tpu_custom_call.1} parent=0
    #allocation3 [shape = 'u8[8192]{0}', space=vmem, size = 0x2000, scoped, tag = 'input window, operand 0']
    #allocation4 [shape = 's32[2]{0}', space=sflag, size = 0x8, scoped, tag = 'scoped memory for tpu_custom_call.1']
    #allocation5 [shape = 's32[2]{0}', space=sflag, size = 0x8, scoped, tag = 'scoped memory for tpu_custom_call.1']
    #allocation6 [shape = 'u8[16384]{0}', space=vmem, size = 0x4000, scoped, tag = 'input window, operand 2, single buffered']
    #allocation7 [shape = 's32[1]{0}', space=sflag, size = 0x4, scoped, tag = 'scoped memory for tpu_custom_call.1']
    #allocation8 [shape = 'u8[8192]{0}', space=vmem, size = 0x2000, scoped, tag = 'output window, operand 0']
    %13 = vsyncpa [#allocation4], 0
    %s14 = scalar_lea.sflag [#allocation4], 1
    %15 = vsyncpa %s14, 0
    %16 = vsyncpa [#allocation7], 0
    %17 = vsyncpa [#allocation5], 0
    %s18 = scalar_lea.sflag [#allocation5], 1
    %19 = vsyncpa %s18, 0
    loop: start=0, step=1, limit=4
    $region2: #{tpu_custom_call.1} parent=1 // loop_pre_header
      _
    $region3: #{tpu_custom_call.1} parent=1 // loop_header
      %s21 = sphi 0, %s25
      %p22 = scmp.ge.s32.totalorder %s21, 4
      %s28 = sphi 0, %s47
      %s29 = sphi 0, %s43
      %s30 = sphi 0, %s39
      %s31 = sphi 0, %s28
      %s32 = sphi 0, %s29
      %s33 = sphi 0, %s30
      %s34 = sphi 0, %s31
      %s35 = sphi 0, %s32
      %s36 = sphi 0, %s33
      %s52 = sphi 0, %s54
      %s55 = sphi 0, %s52
      %s56 = sphi 0, %s55
      %s72 = sphi 0, %s56
      %s80 = sphi 0, %s82
      %s83 = sphi 0, %s80
      %s84 = sphi 0, %s83
      %s100 = sphi 0, %s84
      %s104 = sphi 0, %s104
      %s106 = sphi 0, %s104
      %s107 = sphi 0, %s106
      %s121 = sphi 0, %s107
      %s125 = sphi 0, %s125
      %s127 = sphi 0, %s125
      %s128 = sphi 0, %s127
      %s142 = sphi 0, %s128
      %s146 = sphi 0, %s146
      %s148 = sphi 0, %s146
      %s149 = sphi 0, %s148
      %s163 = sphi 0, %s149
      %s167 = sphi 0, %s167
      %s169 = sphi 0, %s167
      %s170 = sphi 0, %s169
      %s184 = sphi 0, %s170
      %s194 = sphi 0, %s196
      %s197 = sphi 0, %s194
      %s198 = sphi 0, %s197
      %s214 = sphi 0, %s198
    $region4: #{tpu_custom_call.1} parent=1 // loop_header_branch
      %24 = sbr.rel (%p22) target = $region8
    $region5: #{tpu_custom_call.1} parent=1 // loop_body
      %s26 = ssub.s32 %s21, 1
      %s27 = ssub.s32 %s21, 2
      %s37 = sadd.s32 1, %s30
      %p38 = scmp.ge.s32.totalorder %s37, 1
      %s39 = scalar_select %p38, 0, %s37
      %s40 = sadd.s32 1, %s29
      %s41 = scalar_select %p38, %s40, %s29
      %p42 = scmp.ge.s32.totalorder %s41, 1
      %s43 = scalar_select %p42, 0, %s41
      %s44 = sadd.s32 1, %s28
      %s45 = scalar_select %p42, %s44, %s28
      %p46 = scmp.ge.s32.totalorder %s45, 2
      %s47 = scalar_select %p46, 0, %s45
      %s48 = ssub.s32 %s28, %s47
      %s49 = ssub.s32 %s29, %s43
      %s50 = sor.u32 %s48, %s49
      %p51 = scmp.eq.s32.totalorder %s50, 0
      %s53 = sadd.s32 %s52, 1
      %s54 = scalar_select %p51, %s52, %s53
      %p57 = pneg %p51
      %p58 = scmp.eq.s32.totalorder %s21, 1
      %p59 = por %p57, %p58
      %p60 = scmp.ne.s32.totalorder %s52, %s55
      %p61 = scmp.eq.s32.totalorder %s21, 0
      %p62 = por %p60, %p61
      %p63 = scmp.ne.s32.totalorder %s52, %s55
      %p64 = scmp.eq.s32.totalorder %s26, 1
      %p65 = por %p63, %p64
      %p66 = scmp.ne.s32.totalorder %s55, %s56
      %p67 = scmp.eq.s32.totalorder %s26, 0
      %p68 = por %p66, %p67
      %p69 = scmp.ne.s32.totalorder %s55, %s56
      %p70 = scmp.eq.s32.totalorder %s27, 1
      %p71 = por %p69, %p70
      %p73 = scmp.ne.s32.totalorder %s56, %s72
      %p74 = scmp.eq.s32.totalorder %s27, 0
      %p75 = por %p73, %p74
      %s76 = ssub.s32 %s28, %s47
      %s77 = ssub.s32 %s30, %s39
      %s78 = sor.u32 %s76, %s77
      %p79 = scmp.eq.s32.totalorder %s78, 0
      %s81 = sadd.s32 %s80, 1
      %s82 = scalar_select %p79, %s80, %s81
      %p85 = pneg %p79
      %p86 = scmp.eq.s32.totalorder %s21, 1
      %p87 = por %p85, %p86
      %p88 = scmp.ne.s32.totalorder %s80, %s83
      %p89 = scmp.eq.s32.totalorder %s21, 0
      %p90 = por %p88, %p89
      %p91 = scmp.ne.s32.totalorder %s80, %s83
      %p92 = scmp.eq.s32.totalorder %s26, 1
      %p93 = por %p91, %p92
      %p94 = scmp.ne.s32.totalorder %s83, %s84
      %p95 = scmp.eq.s32.totalorder %s26, 0
      %p96 = por %p94, %p95
      %p97 = scmp.ne.s32.totalorder %s83, %s84
      %p98 = scmp.eq.s32.totalorder %s27, 1
      %p99 = por %p97, %p98
      %p101 = scmp.ne.s32.totalorder %s84, %s100
      %p102 = scmp.eq.s32.totalorder %s27, 0
      %p103 = por %p101, %p102
      %s105 = sadd.s32 %s104, 1
      %p108 = scmp.eq.s32.totalorder %s21, 1
      %p109 = scmp.ne.s32.totalorder %s104, %s106
      %p110 = scmp.eq.s32.totalorder %s21, 0
      %p111 = por %p109, %p110
      %p112 = scmp.ne.s32.totalorder %s104, %s106
      %p113 = scmp.eq.s32.totalorder %s26, 1
      %p114 = por %p112, %p113
      %p115 = scmp.ne.s32.totalorder %s106, %s107
      %p116 = scmp.eq.s32.totalorder %s26, 0
      %p117 = por %p115, %p116
      %p118 = scmp.ne.s32.totalorder %s106, %s107
      %p119 = scmp.eq.s32.totalorder %s27, 1
      %p120 = por %p118, %p119
      %p122 = scmp.ne.s32.totalorder %s107, %s121
      %p123 = scmp.eq.s32.totalorder %s27, 0
      %p124 = por %p122, %p123
      %s126 = sadd.s32 %s125, 1
      %p129 = scmp.eq.s32.totalorder %s21, 1
      %p130 = scmp.ne.s32.totalorder %s125, %s127
      %p131 = scmp.eq.s32.totalorder %s21, 0
      %p132 = por %p130, %p131
      %p133 = scmp.ne.s32.totalorder %s125, %s127
      %p134 = scmp.eq.s32.totalorder %s26, 1
      %p135 = por %p133, %p134
      %p136 = scmp.ne.s32.totalorder %s127, %s128
      %p137 = scmp.eq.s32.totalorder %s26, 0
      %p138 = por %p136, %p137
      %p139 = scmp.ne.s32.totalorder %s127, %s128
      %p140 = scmp.eq.s32.totalorder %s27, 1
      %p141 = por %p139, %p140
      %p143 = scmp.ne.s32.totalorder %s128, %s142
      %p144 = scmp.eq.s32.totalorder %s27, 0
      %p145 = por %p143, %p144
      %s147 = sadd.s32 %s146, 1
      %p150 = scmp.eq.s32.totalorder %s21, 1
      %p151 = scmp.ne.s32.totalorder %s146, %s148
      %p152 = scmp.eq.s32.totalorder %s21, 0
      %p153 = por %p151, %p152
      %p154 = scmp.ne.s32.totalorder %s146, %s148
      %p155 = scmp.eq.s32.totalorder %s26, 1
      %p156 = por %p154, %p155
      %p157 = scmp.ne.s32.totalorder %s148, %s149
      %p158 = scmp.eq.s32.totalorder %s26, 0
      %p159 = por %p157, %p158
      %p160 = scmp.ne.s32.totalorder %s148, %s149
      %p161 = scmp.eq.s32.totalorder %s27, 1
      %p162 = por %p160, %p161
      %p164 = scmp.ne.s32.totalorder %s149, %s163
      %p165 = scmp.eq.s32.totalorder %s27, 0
      %p166 = por %p164, %p165
      %s168 = sadd.s32 %s167, 1
      %p171 = scmp.eq.s32.totalorder %s21, 1
      %p172 = scmp.ne.s32.totalorder %s167, %s169
      %p173 = scmp.eq.s32.totalorder %s21, 0
      %p174 = por %p172, %p173
      %p175 = scmp.ne.s32.totalorder %s167, %s169
      %p176 = scmp.eq.s32.totalorder %s26, 1
      %p177 = por %p175, %p176
      %p178 = scmp.ne.s32.totalorder %s169, %s170
      %p179 = scmp.eq.s32.totalorder %s26, 0
      %p180 = por %p178, %p179
      %p181 = scmp.ne.s32.totalorder %s169, %s170
      %p182 = scmp.eq.s32.totalorder %s27, 1
      %p183 = por %p181, %p182
      %p185 = scmp.ne.s32.totalorder %s170, %s184
      %p186 = scmp.eq.s32.totalorder %s27, 0
      %p187 = por %p185, %p186
      %s188 = ssub.s32 %s28, %s47
      %s189 = ssub.s32 %s29, %s43
      %s190 = sor.u32 %s188, %s189
      %s191 = ssub.s32 %s30, %s39
      %s192 = sor.u32 %s190, %s191
      %p193 = scmp.eq.s32.totalorder %s192, 0
      %s195 = sadd.s32 %s194, 1
      %s196 = scalar_select %p193, %s194, %s195
      %p199 = pneg %p193
      %p200 = scmp.eq.s32.totalorder %s21, 1
      %p201 = por %p199, %p200
      %p202 = scmp.ne.s32.totalorder %s194, %s197
      %p203 = scmp.eq.s32.totalorder %s21, 0
      %p204 = por %p202, %p203
      %p205 = scmp.ne.s32.totalorder %s194, %s197
      %p206 = scmp.eq.s32.totalorder %s26, 1
      %p207 = por %p205, %p206
      %p208 = scmp.ne.s32.totalorder %s197, %s198
      %p209 = scmp.eq.s32.totalorder %s26, 0
      %p210 = por %p208, %p209
      %p211 = scmp.ne.s32.totalorder %s197, %s198
      %p212 = scmp.eq.s32.totalorder %s27, 1
      %p213 = por %p211, %p212
      %p215 = scmp.ne.s32.totalorder %s198, %s214
      %p216 = scmp.eq.s32.totalorder %s27, 0
      %p217 = por %p215, %p216
      %p218 = scmp.le.s32.totalorder 1, %s21
      %p219 = scmp.lt.s32.totalorder %s21, 3
      %p220 = pnand %p218, %p219
      %p221 = pneg %p220
      // Predicated region
      $region9: #{tpu_custom_call.1} parent=5 // pred_check
        _
      $region10: #{tpu_custom_call.1} parent=5 // pred_check_branch
        %223 = sbr.rel (%p220) target = $region12
      $region11: #{tpu_custom_call.1} parent=5 // pred_region
        %s224 = ssub.s32 %s21, 1
        // Predicated region
        $region13: #{tpu_custom_call.1} parent=11 // pred_check
          %p225 = pneg %p117
        $region14: #{tpu_custom_call.1} parent=11 // pred_check_branch
          %227 = sbr.rel (%p225) target = $region16
        $region15: #{tpu_custom_call.1} parent=11 // pred_region
          %s229 = ssub.s32 512, 512
          %230 = vsyncadd [#allocation7], %s229
          %s231 = sshll.u32 [#allocation6], 4
          %s232 = int_to_ptr.vmem [resolvable:$true] %s231
          %237 = dma.hbm_to_vmem [thread:$0]  %s2, 512, %s232, [#allocation7], 128, 128, 8
        $region16: #{tpu_custom_call.1} parent=11 // pred_fallthru
          _
        // Predicated region
        $region17: #{tpu_custom_call.1} parent=11 // pred_check
          %p238 = pneg %p138
        $region18: #{tpu_custom_call.1} parent=11 // pred_check_branch
          %240 = sbr.rel (%p238) target = $region20
        $region19: #{tpu_custom_call.1} parent=11 // pred_region
          _
        $region20: #{tpu_custom_call.1} parent=11 // pred_fallthru
          _
        // Predicated region
        $region21: #{tpu_custom_call.1} parent=11 // pred_check
          %p241 = pneg %p159
        $region22: #{tpu_custom_call.1} parent=11 // pred_check_branch
          %243 = sbr.rel (%p241) target = $region24
        $region23: #{tpu_custom_call.1} parent=11 // pred_region
          _
        $region24: #{tpu_custom_call.1} parent=11 // pred_fallthru
          _
        // Predicated region
        $region25: #{tpu_custom_call.1} parent=11 // pred_check
          %p244 = pneg %p180
        $region26: #{tpu_custom_call.1} parent=11 // pred_check_branch
          %246 = sbr.rel (%p244) target = $region28
        $region27: #{tpu_custom_call.1} parent=11 // pred_region
          _
        $region28: #{tpu_custom_call.1} parent=11 // pred_fallthru
          _
      $region12: #{tpu_custom_call.1} parent=5 // pred_fallthru
        _
      %p247 = scmp.lt.s32.totalorder %s21, 2
      // Predicated region
      $region29: #{tpu_custom_call.1} parent=5 // pred_check
        %p248 = pneg %p247
      $region30: #{tpu_custom_call.1} parent=5 // pred_check_branch
        %250 = sbr.rel (%p248) target = $region32
      $region31: #{tpu_custom_call.1} parent=5 // pred_region
        // Predicated region
        $region33: #{tpu_custom_call.1} parent=31 // pred_check
          %p251 = pneg %p62
        $region34: #{tpu_custom_call.1} parent=31 // pred_check_branch
          %253 = sbr.rel (%p251) target = $region36
        $region35: #{tpu_custom_call.1} parent=31 // pred_region
          %s254 = sand.u32 %s52, 1
          %s255 = scalar_lea.sflag [#allocation4], %s254
          %s256 = sand.u32 %s52, 1
          %s257 = smul.addr %s256, 8
          %s258 = scalar_lea.vmem [#allocation3], %s257
          %s260 = ssub.s32 128, 128
          %261 = vsyncadd %s255, %s260
          %s262 = sadd.s32 %s29, %s28
          %s263 = smul.addr %s262, 128
          %s264 = scalar_lea.hbm %s0, %s263
          %s266 = sshll.u32 %s258, 4
          %s267 = int_to_ptr.vmem [resolvable:$true] %s266
          %269 = dma.hbm_to_vmem [thread:$0]  %s264, 128, %s267, %s255
        $region36: #{tpu_custom_call.1} parent=31 // pred_fallthru
          _
        // Predicated region
        $region37: #{tpu_custom_call.1} parent=31 // pred_check
          %p270 = pneg %p90
        $region38: #{tpu_custom_call.1} parent=31 // pred_check_branch
          %272 = sbr.rel (%p270) target = $region40
        $region39: #{tpu_custom_call.1} parent=31 // pred_region
          %p273 = scmp.lt.s32.totalorder %s28, 1
          %s274 = scalar_select %p273, %s28, 1
          %p275 = scmp.lt.s32.totalorder %s30, 0
          %s276 = scalar_select %p275, %s30, 0
          %s277 = smul.addr %s274, 4
          %s278 = sadd.s32 %s276, %s277
          %s279 = smul.addr %s278, 8
          %s280 = scalar_lea.vmem %s1, %s279
        $region40: #{tpu_custom_call.1} parent=31 // pred_fallthru
          _
      $region32: #{tpu_custom_call.1} parent=5 // pred_fallthru
        _
      %p281 = scmp.le.s32.totalorder 1, %s21
      %p282 = scmp.lt.s32.totalorder %s21, 3
      %p283 = pnand %p281, %p282
      %p284 = pneg %p283
      // Predicated region
      $region41: #{tpu_custom_call.1} parent=5 // pred_check
        _
      $region42: #{tpu_custom_call.1} parent=5 // pred_check_branch
        %286 = sbr.rel (%p283) target = $region44
      $region43: #{tpu_custom_call.1} parent=5 // pred_region
        %s287 = ssub.s32 %s21, 1
        %s288 = sand.u32 %s55, 1
        %s289 = scalar_lea.sflag [#allocation4], %s288
        %s290 = sand.u32 %s55, 1
        %s291 = smul.addr %s290, 8
        %s292 = scalar_lea.vmem [#allocation3], %s291
        // Predicated region
        $region45: #{tpu_custom_call.1} parent=43 // pred_check
          %p293 = pneg %p68
        $region46: #{tpu_custom_call.1} parent=43 // pred_check_branch
          %295 = sbr.rel (%p293) target = $region48
        $region47: #{tpu_custom_call.1} parent=43 // pred_region
          %296 = dma.done %s289, 128
        $region48: #{tpu_custom_call.1} parent=43 // pred_fallthru
          _
        // Predicated region
        $region49: #{tpu_custom_call.1} parent=43 // pred_check
          %p297 = pneg %p117
        $region50: #{tpu_custom_call.1} parent=43 // pred_check_branch
          %299 = sbr.rel (%p297) target = $region52
        $region51: #{tpu_custom_call.1} parent=43 // pred_region
          %300 = dma.done [#allocation7], 512
        $region52: #{tpu_custom_call.1} parent=43 // pred_fallthru
          _
        %s301 = sand.u32 %s55, 1
        %s302 = scalar_lea.sflag [#allocation4], %s301
        %s303 = sand.u32 %s55, 1
        %s304 = smul.addr %s303, 8
        %s305 = scalar_lea.vmem [#allocation3], %s304
        %p306 = pneg %p68
        %p307 = pneg %p65
        %p308 = scmp.lt.s32.totalorder %s31, 1
        %s309 = scalar_select %p308, %s31, 1
        %p310 = scmp.lt.s32.totalorder %s33, 0
        %s311 = scalar_select %p310, %s33, 0
        %s312 = smul.addr %s309, 4
        %s313 = sadd.s32 %s311, %s312
        %s314 = smul.addr %s313, 8
        %s315 = scalar_lea.vmem %s1, %s314
        %p316 = pneg %p96
        %p317 = pneg %p93
        %p318 = pneg %p117
        %p319 = pneg %p114
        %p320 = pneg %p138
        %p321 = pneg %p135
        %p322 = pneg %p159
        %p323 = pneg %p156
        %p324 = pneg %p180
        %p325 = pneg %p177
        %p326 = pneg %p210
        %p327 = pneg %p207
        %s328 = sand.u32 %s197, 1
        %s329 = scalar_lea.sflag [#allocation5], %s328
        %s330 = sand.u32 %s197, 1
        %s331 = smul.addr %s330, 8
        %s332 = scalar_lea.vmem [#allocation8], %s331
        %p333 = scmp.lt.s32.totalorder %s31, 1
        %s334 = scalar_select %p333, %s31, 1
        %p335 = scmp.lt.s32.totalorder %s33, 0
        %s336 = scalar_select %p335, %s33, 0
        %s337 = smul.addr %s334, 4
        %s338 = sadd.s32 %s336, %s337
        %s339 = smul.addr %s338, 8
        %s340 = scalar_lea.vmem %s1, %s339
        %v341 = vld [vmem:[#allocation6] sm:$0xff]
        %v342 = vld [vmem:[#allocation6 + $0x8] sm:$0xff]
        %v343 = vld [vmem:[#allocation6 + $0x10] sm:$0xff]
        %v344 = vld [vmem:[#allocation6 + $0x18] sm:$0xff]
        %v345 = vld [vmem:[%s3] sm:$0xff]
        %v346 = vld [vmem:[%s3 + $0x8] sm:$0xff]
        %v347 = vld [vmem:[%s3 + $0x10] sm:$0xff]
        %v348 = vld [vmem:[%s3 + $0x18] sm:$0xff]
        %v349 = vld [vmem:[%s4] sm:$0xff]
        %v350 = vld [vmem:[%s4 + $0x8] sm:$0xff]
        %v351 = vld [vmem:[%s4 + $0x10] sm:$0xff]
        %v352 = vld [vmem:[%s4 + $0x18] sm:$0xff]
        %v353 = vld [vmem:[#allocation2] sm:$0x1]
        %s354 = vtos %v353
        %v355 = vld [vmem:[%s340] sm:$0xff]
        %v356 = vld [vmem:[%s340 + $0x8] sm:$0xff]
        %v357 = vld [vmem:[%s340 + $0x10] sm:$0xff]
        %v358 = vld [vmem:[%s340 + $0x18] sm:$0xff]
        %v359 = vld [vmem:[%s292] sm:$0xff]
        %v360 = vlaneseq
        %v361 = vshrl.u32 %v360, 7
        %v362 = vsub.s32 0, %v361
        %v363 = vrot.slane %v359, %v362
        %365 = vbcast.lane.b32.xlu0 %v363, 256
        %v366 = vpop.permute.xlu0 %365
        %s368 = sor.u32 256, 8
        %369 = vbcast.lane.b32.xlu0 %v363, %s368
        %v370 = vpop.permute.xlu0 %369
        %s372 = sor.u32 256, 16
        %373 = vbcast.lane.b32.xlu0 %v363, %s372
        %v374 = vpop.permute.xlu0 %373
        %s376 = sor.u32 256, 24
        %377 = vbcast.lane.b32.xlu0 %v363, %s376
        %v378 = vpop.permute.xlu0 %377
        %v379 = vlaneseq
        %v380 = vshrl.u32 %v379, 7
        %v381 = vsub.s32 1, %v380
        %v382 = vrot.slane %v359, %v381
        %384 = vbcast.lane.b32.xlu0 %v382, 256
        %v385 = vpop.permute.xlu0 %384
        %s387 = sor.u32 256, 8
        %388 = vbcast.lane.b32.xlu0 %v382, %s387
        %v389 = vpop.permute.xlu0 %388
        %s391 = sor.u32 256, 16
        %392 = vbcast.lane.b32.xlu0 %v382, %s391
        %v393 = vpop.permute.xlu0 %392
        %s395 = sor.u32 256, 24
        %396 = vbcast.lane.b32.xlu0 %v382, %s395
        %v397 = vpop.permute.xlu0 %396
        %v398 = vlaneseq
        %v399 = vshrl.u32 %v398, 7
        %v400 = vsub.s32 2, %v399
        %v401 = vrot.slane %v359, %v400
        %403 = vbcast.lane.b32.xlu0 %v401, 256
        %v404 = vpop.permute.xlu0 %403
        %s406 = sor.u32 256, 8
        %407 = vbcast.lane.b32.xlu0 %v401, %s406
        %v408 = vpop.permute.xlu0 %407
        %s410 = sor.u32 256, 16
        %411 = vbcast.lane.b32.xlu0 %v401, %s410
        %v412 = vpop.permute.xlu0 %411
        %s414 = sor.u32 256, 24
        %415 = vbcast.lane.b32.xlu0 %v401, %s414
        %v416 = vpop.permute.xlu0 %415
        %v417 = vlaneseq
        %v418 = vshrl.u32 %v417, 7
        %v419 = vsub.s32 3, %v418
        %v420 = vrot.slane %v359, %v419
        %422 = vbcast.lane.b32.xlu0 %v420, 256
        %v423 = vpop.permute.xlu0 %422
        %s425 = sor.u32 256, 8
        %426 = vbcast.lane.b32.xlu0 %v420, %s425
        %v427 = vpop.permute.xlu0 %426
        %s429 = sor.u32 256, 16
        %430 = vbcast.lane.b32.xlu0 %v420, %s429
        %v431 = vpop.permute.xlu0 %430
        %s433 = sor.u32 256, 24
        %434 = vbcast.lane.b32.xlu0 %v420, %s433
        %v435 = vpop.permute.xlu0 %434
        %v436 = vlaneseq
        %v437 = vshrl.u32 %v436, 7
        %v438 = vsub.s32 4, %v437
        %v439 = vrot.slane %v359, %v438
        %441 = vbcast.lane.b32.xlu0 %v439, 256
        %v442 = vpop.permute.xlu0 %441
        %s444 = sor.u32 256, 8
        %445 = vbcast.lane.b32.xlu0 %v439, %s444
        %v446 = vpop.permute.xlu0 %445
        %s448 = sor.u32 256, 16
        %449 = vbcast.lane.b32.xlu0 %v439, %s448
        %v450 = vpop.permute.xlu0 %449
        %s452 = sor.u32 256, 24
        %453 = vbcast.lane.b32.xlu0 %v439, %s452
        %v454 = vpop.permute.xlu0 %453
        %v455 = vlaneseq
        %v456 = vshrl.u32 %v455, 7
        %v457 = vsub.s32 5, %v456
        %v458 = vrot.slane %v359, %v457
        %460 = vbcast.lane.b32.xlu0 %v458, 256
        %v461 = vpop.permute.xlu0 %460
        %s463 = sor.u32 256, 8
        %464 = vbcast.lane.b32.xlu0 %v458, %s463
        %v465 = vpop.permute.xlu0 %464
        %s467 = sor.u32 256, 16
        %468 = vbcast.lane.b32.xlu0 %v458, %s467
        %v469 = vpop.permute.xlu0 %468
        %s471 = sor.u32 256, 24
        %472 = vbcast.lane.b32.xlu0 %v458, %s471
        %v473 = vpop.permute.xlu0 %472
        %v474 = vlaneseq
        %v475 = vshrl.u32 %v474, 7
        %v476 = vsub.s32 6, %v475
        %v477 = vrot.slane %v359, %v476
        %479 = vbcast.lane.b32.xlu0 %v477, 256
        %v480 = vpop.permute.xlu0 %479
        %s482 = sor.u32 256, 8
        %483 = vbcast.lane.b32.xlu0 %v477, %s482
        %v484 = vpop.permute.xlu0 %483
        %s486 = sor.u32 256, 16
        %487 = vbcast.lane.b32.xlu0 %v477, %s486
        %v488 = vpop.permute.xlu0 %487
        %s490 = sor.u32 256, 24
        %491 = vbcast.lane.b32.xlu0 %v477, %s490
        %v492 = vpop.permute.xlu0 %491
        %v493 = vlaneseq
        %v494 = vshrl.u32 %v493, 7
        %v495 = vsub.s32 7, %v494
        %v496 = vrot.slane %v359, %v495
        %498 = vbcast.lane.b32.xlu0 %v496, 256
        %v499 = vpop.permute.xlu0 %498
        %s501 = sor.u32 256, 8
        %502 = vbcast.lane.b32.xlu0 %v496, %s501
        %v503 = vpop.permute.xlu0 %502
        %s505 = sor.u32 256, 16
        %506 = vbcast.lane.b32.xlu0 %v496, %s505
        %v507 = vpop.permute.xlu0 %506
        %s509 = sor.u32 256, 24
        %510 = vbcast.lane.b32.xlu0 %v496, %s509
        %v511 = vpop.permute.xlu0 %510
        %v512 = vadd.f32 %v366, %v355
        %v513 = vadd.f32 %v370, %v356
        %v514 = vadd.f32 %v374, %v357
        %v515 = vadd.f32 %v378, %v358
        %v516 = vadd.f32 %v385, %v355
        %v517 = vadd.f32 %v389, %v356
        %v518 = vadd.f32 %v393, %v357
        %v519 = vadd.f32 %v397, %v358
        %v520 = vadd.f32 %v404, %v355
        %v521 = vadd.f32 %v408, %v356
        %v522 = vadd.f32 %v412, %v357
        %v523 = vadd.f32 %v416, %v358
        %v524 = vadd.f32 %v423, %v355
        %v525 = vadd.f32 %v427, %v356
        %v526 = vadd.f32 %v431, %v357
        %v527 = vadd.f32 %v435, %v358
        %v528 = vadd.f32 %v442, %v355
        %v529 = vadd.f32 %v446, %v356
        %v530 = vadd.f32 %v450, %v357
        %v531 = vadd.f32 %v454, %v358
        %v532 = vadd.f32 %v461, %v355
        %v533 = vadd.f32 %v465, %v356
        %v534 = vadd.f32 %v469, %v357
        %v535 = vadd.f32 %v473, %v358
        %v536 = vadd.f32 %v480, %v355
        %v537 = vadd.f32 %v484, %v356
        %v538 = vadd.f32 %v488, %v357
        %v539 = vadd.f32 %v492, %v358
        %v540 = vadd.f32 %v499, %v355
        %v541 = vadd.f32 %v503, %v356
        %v542 = vadd.f32 %v507, %v357
        %v543 = vadd.f32 %v511, %v358
        %v544 = vmax.f32 %v512, 0.0
        %v545 = vmax.f32 %v513, 0.0
        %v546 = vmax.f32 %v514, 0.0
        %v547 = vmax.f32 %v515, 0.0
        %v548 = vmax.f32 %v516, 0.0
        %v549 = vmax.f32 %v517, 0.0
        %v550 = vmax.f32 %v518, 0.0
        %v551 = vmax.f32 %v519, 0.0
        %v552 = vmax.f32 %v520, 0.0
        %v553 = vmax.f32 %v521, 0.0
        %v554 = vmax.f32 %v522, 0.0
        %v555 = vmax.f32 %v523, 0.0
        %v556 = vmax.f32 %v524, 0.0
        %v557 = vmax.f32 %v525, 0.0
        %v558 = vmax.f32 %v526, 0.0
        %v559 = vmax.f32 %v527, 0.0
        %v560 = vmax.f32 %v528, 0.0
        %v561 = vmax.f32 %v529, 0.0
        %v562 = vmax.f32 %v530, 0.0
        %v563 = vmax.f32 %v531, 0.0
        %v564 = vmax.f32 %v532, 0.0
        %v565 = vmax.f32 %v533, 0.0
        %v566 = vmax.f32 %v534, 0.0
        %v567 = vmax.f32 %v535, 0.0
        %v568 = vmax.f32 %v536, 0.0
        %v569 = vmax.f32 %v537, 0.0
        %v570 = vmax.f32 %v538, 0.0
        %v571 = vmax.f32 %v539, 0.0
        %v572 = vmax.f32 %v540, 0.0
        %v573 = vmax.f32 %v541, 0.0
        %v574 = vmax.f32 %v542, 0.0
        %v575 = vmax.f32 %v543, 0.0
        %577 = vset.pattern.permute.xlu0 0
        %578 = vperm.xlu0 %577, %v345
        %v579 = vpop.permute.xlu0 %578
        %582 = vset.pattern.permute.xlu0 0
        %583 = vperm.xlu0 %582, %v346
        %v584 = vpop.permute.xlu0 %583
        %587 = vset.pattern.permute.xlu0 0
        %588 = vperm.xlu0 %587, %v347
        %v589 = vpop.permute.xlu0 %588
        %592 = vset.pattern.permute.xlu0 0
        %593 = vperm.xlu0 %592, %v348
        %v594 = vpop.permute.xlu0 %593
        %vm596 = vcmask 261120
        %v598 = vsel %vm596, %v341, 0
        %v601 = vsel %vm596, %v342, 0
        %v604 = vsel %vm596, %v343, 0
        %v607 = vsel %vm596, %v344, 0
        %609 = vmatprep.subr.mxu0 0.0
        %610 = vmatpush1.msra.mxu0 %v544
        %611 = vmatprep.subr.mxu0 0.0
        %612 = vmatpush1.msra.mxu0 %v545
        %613 = vmatprep.subr.mxu0 0.0
        %614 = vmatpush1.msra.mxu0 %v546
        %615 = vmatprep.subr.mxu0 0.0
        %616 = vmatpush1.msra.mxu0 %v547
        %617 = vmatprep.subr.mxu0 0.0
        %618 = vmatpush1.msra.mxu0 0.0
        %619 = vmatprep.subr.mxu0 0.0
        %620 = vmatpush1.msra.mxu0 0.0
        %621 = vmatprep.subr.mxu0 0.0
        %622 = vmatpush1.msra.mxu0 0.0
        %623 = vmatprep.subr.mxu0 0.0
        %624 = vmatpush1.msra.mxu0 0.0
        %625 = vmatprep.subr.mxu0 0.0
        %626 = vmatpush1.msra.mxu0 0.0
        %627 = vmatprep.subr.mxu0 0.0
        %628 = vmatpush1.msra.mxu0 0.0
        %629 = vmatprep.subr.mxu0 0.0
        %630 = vmatpush1.msra.mxu0 0.0
        %631 = vmatprep.subr.mxu0 0.0
        %632 = vmatpush1.msra.mxu0 0.0
        %633 = vmatprep.subr.mxu0 0.0
        %634 = vmatpush1.msra.mxu0 0.0
        %635 = vmatprep.subr.mxu0 0.0
        %636 = vmatpush1.msra.mxu0 0.0
        %637 = vmatprep.subr.mxu0 0.0
        %638 = vmatpush1.msra.mxu0 0.0
        %639 = vmatprep.subr.mxu0 0.0
        %640 = vmatpush1.msra.mxu0 0.0
        %641 = vmatprep.subr.mxu0 0.0
        %642 = vmatpush1.msra.mxu0 0.0
        %643 = vmatprep.subr.mxu0 0.0
        %644 = vmatpush1.msra.mxu0 0.0
        %645 = vmatprep.subr.mxu0 0.0
        %646 = vmatpush1.msra.mxu0 0.0
        %647 = vmatprep.subr.mxu0 0.0
        %648 = vmatpush1.msra.mxu0 0.0
        %649 = vmatprep.subr.mxu0 0.0
        %650 = vmatpush1.msra.mxu0 0.0
        %651 = vmatprep.subr.mxu0 0.0
        %652 = vmatpush1.msra.mxu0 0.0
        %653 = vmatprep.subr.mxu0 0.0
        %654 = vmatpush1.msra.mxu0 0.0
        %655 = vmatprep.subr.mxu0 0.0
        %656 = vmatpush1.msra.mxu0 0.0
        %657 = vmatprep.subr.mxu0 0.0
        %658 = vmatpush1.msra.mxu0 0.0
        %659 = vmatprep.subr.mxu0 0.0
        %660 = vmatpush1.msra.mxu0 0.0
        %661 = vmatprep.subr.mxu0 0.0
        %662 = vmatpush1.msra.mxu0 0.0
        %663 = vmatprep.subr.mxu0 0.0
        %664 = vmatpush1.msra.mxu0 0.0
        %665 = vmatprep.subr.mxu0 0.0
        %666 = vmatpush1.msra.mxu0 0.0
        %667 = vmatprep.subr.mxu0 0.0
        %668 = vmatpush1.msra.mxu0 0.0
        %669 = vmatprep.subr.mxu0 0.0
        %670 = vmatpush1.msra.mxu0 0.0
        %671 = vmatprep.subr.mxu0 0.0
        %672 = vmatpush1.msra.mxu0 0.0
        %673 = vmatprep.mubr.f32.mxu0 0.0
        %674 = vmatmul.mubr.f32.gmra.mrb[0].mxu0 %v598
        %v675 = vpop.f32.mrb[0].mxu0
        %v676 = vadd.f32 %v579, %v675
        %v677 = vpop.f32.mrb[0].mxu0
        %678 = vmatprep.mubr.f32.mxu0 0.0
        %679 = vmatmul.mubr.f32.gmra.mrb[0].mxu0 %v601
        %v680 = vpop.f32.mrb[0].mxu0
        %v681 = vadd.f32 %v584, %v680
        %v682 = vpop.f32.mrb[0].mxu0
        %683 = vmatprep.mubr.f32.mxu0 0.0
        %684 = vmatmul.mubr.f32.gmra.mrb[0].mxu0 %v604
        %v685 = vpop.f32.mrb[0].mxu0
        %v686 = vadd.f32 %v589, %v685
        %v687 = vpop.f32.mrb[0].mxu0
        %688 = vmatprep.mubr.f32.mxu0 0.0
        %689 = vmatmul.mubr.f32.gmra.mrb[0].mxu0 %v607
        %v690 = vpop.f32.mrb[0].mxu0
        %v691 = vadd.f32 %v594, %v690
        %v692 = vpop.f32.mrb[0].mxu0
        %693 = vdwg.mxu0
        %694 = vmatprep.subr.mxu0 0.0
        %695 = vmatpush1.msra.mxu0 %v548
        %696 = vmatprep.subr.mxu0 0.0
        %697 = vmatpush1.msra.mxu0 %v549
        %698 = vmatprep.subr.mxu0 0.0
        %699 = vmatpush1.msra.mxu0 %v550
        %700 = vmatprep.subr.mxu0 0.0
        %701 = vmatpush1.msra.mxu0 %v551
        %702 = vmatprep.subr.mxu0 0.0
        %703 = vmatpush1.msra.mxu0 0.0
        %704 = vmatprep.subr.mxu0 0.0
        %705 = vmatpush1.msra.mxu0 0.0
        %706 = vmatprep.subr.mxu0 0.0
        %707 = vmatpush1.msra.mxu0 0.0
        %708 = vmatprep.subr.mxu0 0.0
        %709 = vmatpush1.msra.mxu0 0.0
        %710 = vmatprep.subr.mxu0 0.0
        %711 = vmatpush1.msra.mxu0 0.0
        %712 = vmatprep.subr.mxu0 0.0
        %713 = vmatpush1.msra.mxu0 0.0
        %714 = vmatprep.subr.mxu0 0.0
        %715 = vmatpush1.msra.mxu0 0.0
        %716 = vmatprep.subr.mxu0 0.0
        %717 = vmatpush1.msra.mxu0 0.0
        %718 = vmatprep.subr.mxu0 0.0
        %719 = vmatpush1.msra.mxu0 0.0
        %720 = vmatprep.subr.mxu0 0.0
        %721 = vmatpush1.msra.mxu0 0.0
        %722 = vmatprep.subr.mxu0 0.0
        %723 = vmatpush1.msra.mxu0 0.0
        %724 = vmatprep.subr.mxu0 0.0
        %725 = vmatpush1.msra.mxu0 0.0
        %726 = vmatprep.subr.mxu0 0.0
        %727 = vmatpush1.msra.mxu0 0.0
        %728 = vmatprep.subr.mxu0 0.0
        %729 = vmatpush1.msra.mxu0 0.0
        %730 = vmatprep.subr.mxu0 0.0
        %731 = vmatpush1.msra.mxu0 0.0
        %732 = vmatprep.subr.mxu0 0.0
        %733 = vmatpush1.msra.mxu0 0.0
        %734 = vmatprep.subr.mxu0 0.0
        %735 = vmatpush1.msra.mxu0 0.0
        %736 = vmatprep.subr.mxu0 0.0
        %737 = vmatpush1.msra.mxu0 0.0
        %738 = vmatprep.subr.mxu0 0.0
        %739 = vmatpush1.msra.mxu0 0.0
        %740 = vmatprep.subr.mxu0 0.0
        %741 = vmatpush1.msra.mxu0 0.0
        %742 = vmatprep.subr.mxu0 0.0
        %743 = vmatpush1.msra.mxu0 0.0
        %744 = vmatprep.subr.mxu0 0.0
        %745 = vmatpush1.msra.mxu0 0.0
        %746 = vmatprep.subr.mxu0 0.0
        %747 = vmatpush1.msra.mxu0 0.0
        %748 = vmatprep.subr.mxu0 0.0
        %749 = vmatpush1.msra.mxu0 0.0
        %750 = vmatprep.subr.mxu0 0.0
        %751 = vmatpush1.msra.mxu0 0.0
        %752 = vmatprep.subr.mxu0 0.0
        %753 = vmatpush1.msra.mxu0 0.0
        %754 = vmatprep.subr.mxu0 0.0
        %755 = vmatpush1.msra.mxu0 0.0
        %756 = vmatprep.subr.mxu0 0.0
        %757 = vmatpush1.msra.mxu0 0.0
        %758 = vmatprep.mubr.f32.mxu0 0.0
        %759 = vmatmul.mubr.f32.gmra.mrb[0].mxu0 %v598
        %v760 = vpop.f32.mrb[0].mxu0
        %v761 = vadd.f32 %v579, %v760
        %v762 = vpop.f32.mrb[0].mxu0
        %763 = vmatprep.mubr.f32.mxu0 0.0
        %764 = vmatmul.mubr.f32.gmra.mrb[0].mxu0 %v601
        %v765 = vpop.f32.mrb[0].mxu0
        %v766 = vadd.f32 %v584, %v765
        %v767 = vpop.f32.mrb[0].mxu0
        %768 = vmatprep.mubr.f32.mxu0 0.0
        %769 = vmatmul.mubr.f32.gmra.mrb[0].mxu0 %v604
        %v770 = vpop.f32.mrb[0].mxu0
        %v771 = vadd.f32 %v589, %v770
        %v772 = vpop.f32.mrb[0].mxu0
        %773 = vmatprep.mubr.f32.mxu0 0.0
        %774 = vmatmul.mubr.f32.gmra.mrb[0].mxu0 %v607
        %v775 = vpop.f32.mrb[0].mxu0
        %v776 = vadd.f32 %v594, %v775
        %v777 = vpop.f32.mrb[0].mxu0
        %778 = vdwg.mxu0
        %779 = vmatprep.subr.mxu0 0.0
        %780 = vmatpush1.msra.mxu0 %v552
        %781 = vmatprep.subr.mxu0 0.0
        %782 = vmatpush1.msra.mxu0 %v553
        %783 = vmatprep.subr.mxu0 0.0
        %784 = vmatpush1.msra.mxu0 %v554
        %785 = vmatprep.subr.mxu0 0.0
        %786 = vmatpush1.msra.mxu0 %v555
        %787 = vmatprep.subr.mxu0 0.0
        %788 = vmatpush1.msra.mxu0 0.0
        %789 = vmatprep.subr.mxu0 0.0
        %790 = vmatpush1.msra.mxu0 0.0
        %791 = vmatprep.subr.mxu0 0.0
        %792 = vmatpush1.msra.mxu0 0.0
        %793 = vmatprep.subr.mxu0 0.0
        %794 = vmatpush1.msra.mxu0 0.0
        %795 = vmatprep.subr.mxu0 0.0
        %796 = vmatpush1.msra.mxu0 0.0
        %797 = vmatprep.subr.mxu0 0.0
        %798 = vmatpush1.msra.mxu0 0.0
        %799 = vmatprep.subr.mxu0 0.0
        %800 = vmatpush1.msra.mxu0 0.0
        %801 = vmatprep.subr.mxu0 0.0
        %802 = vmatpush1.msra.mxu0 0.0
        %803 = vmatprep.subr.mxu0 0.0
        %804 = vmatpush1.msra.mxu0 0.0
        %805 = vmatprep.subr.mxu0 0.0
        %806 = vmatpush1.msra.mxu0 0.0
        %807 = vmatprep.subr.mxu0 0.0
        %808 = vmatpush1.msra.mxu0 0.0
        %809 = vmatprep.subr.mxu0 0.0
        %810 = vmatpush1.msra.mxu0 0.0
        %811 = vmatprep.subr.mxu0 0.0
        %812 = vmatpush1.msra.mxu0 0.0
        %813 = vmatprep.subr.mxu0 0.0
        %814 = vmatpush1.msra.mxu0 0.0
        %815 = vmatprep.subr.mxu0 0.0
        %816 = vmatpush1.msra.mxu0 0.0
        %817 = vmatprep.subr.mxu0 0.0
        %818 = vmatpush1.msra.mxu0 0.0
        %819 = vmatprep.subr.mxu0 0.0
        %820 = vmatpush1.msra.mxu0 0.0
        %821 = vmatprep.subr.mxu0 0.0
        %822 = vmatpush1.msra.mxu0 0.0
        %823 = vmatprep.subr.mxu0 0.0
        %824 = vmatpush1.msra.mxu0 0.0
        %825 = vmatprep.subr.mxu0 0.0
        %826 = vmatpush1.msra.mxu0 0.0
        %827 = vmatprep.subr.mxu0 0.0
        %828 = vmatpush1.msra.mxu0 0.0
        %829 = vmatprep.subr.mxu0 0.0
        %830 = vmatpush1.msra.mxu0 0.0
        %831 = vmatprep.subr.mxu0 0.0
        %832 = vmatpush1.msra.mxu0 0.0
        %833 = vmatprep.subr.mxu0 0.0
        %834 = vmatpush1.msra.mxu0 0.0
        %835 = vmatprep.subr.mxu0 0.0
        %836 = vmatpush1.msra.mxu0 0.0
        %837 = vmatprep.subr.mxu0 0.0
        %838 = vmatpush1.msra.mxu0 0.0
        %839 = vmatprep.subr.mxu0 0.0
        %840 = vmatpush1.msra.mxu0 0.0
        %841 = vmatprep.subr.mxu0 0.0
        %842 = vmatpush1.msra.mxu0 0.0
        %843 = vmatprep.mubr.f32.mxu0 0.0
        %844 = vmatmul.mubr.f32.gmra.mrb[0].mxu0 %v598
        %v845 = vpop.f32.mrb[0].mxu0
        %v846 = vadd.f32 %v579, %v845
        %v847 = vpop.f32.mrb[0].mxu0
        %848 = vmatprep.mubr.f32.mxu0 0.0
        %849 = vmatmul.mubr.f32.gmra.mrb[0].mxu0 %v601
        %v850 = vpop.f32.mrb[0].mxu0
        %v851 = vadd.f32 %v584, %v850
        %v852 = vpop.f32.mrb[0].mxu0
        %853 = vmatprep.mubr.f32.mxu0 0.0
        %854 = vmatmul.mubr.f32.gmra.mrb[0].mxu0 %v604
        %v855 = vpop.f32.mrb[0].mxu0
        %v856 = vadd.f32 %v589, %v855
        %v857 = vpop.f32.mrb[0].mxu0
        %858 = vmatprep.mubr.f32.mxu0 0.0
        %859 = vmatmul.mubr.f32.gmra.mrb[0].mxu0 %v607
        %v860 = vpop.f32.mrb[0].mxu0
        %v861 = vadd.f32 %v594, %v860
        %v862 = vpop.f32.mrb[0].mxu0
        %863 = vdwg.mxu0
        %864 = vmatprep.subr.mxu0 0.0
        %865 = vmatpush1.msra.mxu0 %v556
        %866 = vmatprep.subr.mxu0 0.0
        %867 = vmatpush1.msra.mxu0 %v557
        %868 = vmatprep.subr.mxu0 0.0
        %869 = vmatpush1.msra.mxu0 %v558
        %870 = vmatprep.subr.mxu0 0.0
        %871 = vmatpush1.msra.mxu0 %v559
        %872 = vmatprep.subr.mxu0 0.0
        %873 = vmatpush1.msra.mxu0 0.0
        %874 = vmatprep.subr.mxu0 0.0
        %875 = vmatpush1.msra.mxu0 0.0
        %876 = vmatprep.subr.mxu0 0.0
        %877 = vmatpush1.msra.mxu0 0.0
        %878 = vmatprep.subr.mxu0 0.0
        %879 = vmatpush1.msra.mxu0 0.0
        %880 = vmatprep.subr.mxu0 0.0
        %881 = vmatpush1.msra.mxu0 0.0
        %882 = vmatprep.subr.mxu0 0.0
        %883 = vmatpush1.msra.mxu0 0.0
        %884 = vmatprep.subr.mxu0 0.0
        %885 = vmatpush1.msra.mxu0 0.0
        %886 = vmatprep.subr.mxu0 0.0
        %887 = vmatpush1.msra.mxu0 0.0
        %888 = vmatprep.subr.mxu0 0.0
        %889 = vmatpush1.msra.mxu0 0.0
        %890 = vmatprep.subr.mxu0 0.0
        %891 = vmatpush1.msra.mxu0 0.0
        %892 = vmatprep.subr.mxu0 0.0
        %893 = vmatpush1.msra.mxu0 0.0
        %894 = vmatprep.subr.mxu0 0.0
        %895 = vmatpush1.msra.mxu0 0.0
        %896 = vmatprep.subr.mxu0 0.0
        %897 = vmatpush1.msra.mxu0 0.0
        %898 = vmatprep.subr.mxu0 0.0
        %899 = vmatpush1.msra.mxu0 0.0
        %900 = vmatprep.subr.mxu0 0.0
        %901 = vmatpush1.msra.mxu0 0.0
        %902 = vmatprep.subr.mxu0 0.0
        %903 = vmatpush1.msra.mxu0 0.0
        %904 = vmatprep.subr.mxu0 0.0
        %905 = vmatpush1.msra.mxu0 0.0
        %906 = vmatprep.subr.mxu0 0.0
        %907 = vmatpush1.msra.mxu0 0.0
        %908 = vmatprep.subr.mxu0 0.0
        %909 = vmatpush1.msra.mxu0 0.0
        %910 = vmatprep.subr.mxu0 0.0
        %911 = vmatpush1.msra.mxu0 0.0
        %912 = vmatprep.subr.mxu0 0.0
        %913 = vmatpush1.msra.mxu0 0.0
        %914 = vmatprep.subr.mxu0 0.0
        %915 = vmatpush1.msra.mxu0 0.0
        %916 = vmatprep.subr.mxu0 0.0
        %917 = vmatpush1.msra.mxu0 0.0
        %918 = vmatprep.subr.mxu0 0.0
        %919 = vmatpush1.msra.mxu0 0.0
        %920 = vmatprep.subr.mxu0 0.0
        %921 = vmatpush1.msra.mxu0 0.0
        %922 = vmatprep.subr.mxu0 0.0
        %923 = vmatpush1.msra.mxu0 0.0
        %924 = vmatprep.subr.mxu0 0.0
        %925 = vmatpush1.msra.mxu0 0.0
        %926 = vmatprep.subr.mxu0 0.0
        %927 = vmatpush1.msra.mxu0 0.0
        %928 = vmatprep.mubr.f32.mxu0 0.0
        %929 = vmatmul.mubr.f32.gmra.mrb[0].mxu0 %v598
        %v930 = vpop.f32.mrb[0].mxu0
        %v931 = vadd.f32 %v579, %v930
        %v932 = vpop.f32.mrb[0].mxu0
        %933 = vmatprep.mubr.f32.mxu0 0.0
        %934 = vmatmul.mubr.f32.gmra.mrb[0].mxu0 %v601
        %v935 = vpop.f32.mrb[0].mxu0
        %v936 = vadd.f32 %v584, %v935
        %v937 = vpop.f32.mrb[0].mxu0
        %938 = vmatprep.mubr.f32.mxu0 0.0
        %939 = vmatmul.mubr.f32.gmra.mrb[0].mxu0 %v604
        %v940 = vpop.f32.mrb[0].mxu0
        %v941 = vadd.f32 %v589, %v940
        %v942 = vpop.f32.mrb[0].mxu0
        %943 = vmatprep.mubr.f32.mxu0 0.0
        %944 = vmatmul.mubr.f32.gmra.mrb[0].mxu0 %v607
        %v945 = vpop.f32.mrb[0].mxu0
        %v946 = vadd.f32 %v594, %v945
        %v947 = vpop.f32.mrb[0].mxu0
        %948 = vdwg.mxu0
        %949 = vmatprep.subr.mxu0 0.0
        %950 = vmatpush1.msra.mxu0 %v560
        %951 = vmatprep.subr.mxu0 0.0
        %952 = vmatpush1.msra.mxu0 %v561
        %953 = vmatprep.subr.mxu0 0.0
        %954 = vmatpush1.msra.mxu0 %v562
        %955 = vmatprep.subr.mxu0 0.0
        %956 = vmatpush1.msra.mxu0 %v563
        %957 = vmatprep.subr.mxu0 0.0
        %958 = vmatpush1.msra.mxu0 0.0
        %959 = vmatprep.subr.mxu0 0.0
        %960 = vmatpush1.msra.mxu0 0.0
        %961 = vmatprep.subr.mxu0 0.0
        %962 = vmatpush1.msra.mxu0 0.0
        %963 = vmatprep.subr.mxu0 0.0
        %964 = vmatpush1.msra.mxu0 0.0
        %965 = vmatprep.subr.mxu0 0.0
        %966 = vmatpush1.msra.mxu0 0.0
        %967 = vmatprep.subr.mxu0 0.0
        %968 = vmatpush1.msra.mxu0 0.0
        %969 = vmatprep.subr.mxu0 0.0
        %970 = vmatpush1.msra.mxu0 0.0
        %971 = vmatprep.subr.mxu0 0.0
        %972 = vmatpush1.msra.mxu0 0.0
        %973 = vmatprep.subr.mxu0 0.0
        %974 = vmatpush1.msra.mxu0 0.0
        %975 = vmatprep.subr.mxu0 0.0
        %976 = vmatpush1.msra.mxu0 0.0
        %977 = vmatprep.subr.mxu0 0.0
        %978 = vmatpush1.msra.mxu0 0.0
        %979 = vmatprep.subr.mxu0 0.0
        %980 = vmatpush1.msra.mxu0 0.0
        %981 = vmatprep.subr.mxu0 0.0
        %982 = vmatpush1.msra.mxu0 0.0
        %983 = vmatprep.subr.mxu0 0.0
        %984 = vmatpush1.msra.mxu0 0.0
        %985 = vmatprep.subr.mxu0 0.0
        %986 = vmatpush1.msra.mxu0 0.0
        %987 = vmatprep.subr.mxu0 0.0
        %988 = vmatpush1.msra.mxu0 0.0
        %989 = vmatprep.subr.mxu0 0.0
        %990 = vmatpush1.msra.mxu0 0.0
        %991 = vmatprep.subr.mxu0 0.0
        %992 = vmatpush1.msra.mxu0 0.0
        %993 = vmatprep.subr.mxu0 0.0
        %994 = vmatpush1.msra.mxu0 0.0
        %995 = vmatprep.subr.mxu0 0.0
        %996 = vmatpush1.msra.mxu0 0.0
        %997 = vmatprep.subr.mxu0 0.0
        %998 = vmatpush1.msra.mxu0 0.0
        %999 = vmatprep.subr.mxu0 0.0
        %1000 = vmatpush1.msra.mxu0 0.0
        %1001 = vmatprep.subr.mxu0 0.0
        %1002 = vmatpush1.msra.mxu0 0.0
        %1003 = vmatprep.subr.mxu0 0.0
        %1004 = vmatpush1.msra.mxu0 0.0
        %1005 = vmatprep.subr.mxu0 0.0
        %1006 = vmatpush1.msra.mxu0 0.0
        %1007 = vmatprep.subr.mxu0 0.0
        %1008 = vmatpush1.msra.mxu0 0.0
        %1009 = vmatprep.subr.mxu0 0.0
        %1010 = vmatpush1.msra.mxu0 0.0
        %1011 = vmatprep.subr.mxu0 0.0
        %1012 = vmatpush1.msra.mxu0 0.0
        %1013 = vmatprep.mubr.f32.mxu0 0.0
        %1014 = vmatmul.mubr.f32.gmra.mrb[0].mxu0 %v598
        %v1015 = vpop.f32.mrb[0].mxu0
        %v1016 = vadd.f32 %v579, %v1015
        %v1017 = vpop.f32.mrb[0].mxu0
        %1018 = vmatprep.mubr.f32.mxu0 0.0
        %1019 = vmatmul.mubr.f32.gmra.mrb[0].mxu0 %v601
        %v1020 = vpop.f32.mrb[0].mxu0
        %v1021 = vadd.f32 %v584, %v1020
        %v1022 = vpop.f32.mrb[0].mxu0
        %1023 = vmatprep.mubr.f32.mxu0 0.0
        %1024 = vmatmul.mubr.f32.gmra.mrb[0].mxu0 %v604
        %v1025 = vpop.f32.mrb[0].mxu0
        %v1026 = vadd.f32 %v589, %v1025
        %v1027 = vpop.f32.mrb[0].mxu0
        %1028 = vmatprep.mubr.f32.mxu0 0.0
        %1029 = vmatmul.mubr.f32.gmra.mrb[0].mxu0 %v607
        %v1030 = vpop.f32.mrb[0].mxu0
        %v1031 = vadd.f32 %v594, %v1030
        %v1032 = vpop.f32.mrb[0].mxu0
        %1033 = vdwg.mxu0
        %1034 = vmatprep.subr.mxu0 0.0
        %1035 = vmatpush1.msra.mxu0 %v564
        %1036 = vmatprep.subr.mxu0 0.0
        %1037 = vmatpush1.msra.mxu0 %v565
        %1038 = vmatprep.subr.mxu0 0.0
        %1039 = vmatpush1.msra.mxu0 %v566
        %1040 = vmatprep.subr.mxu0 0.0
        %1041 = vmatpush1.msra.mxu0 %v567
        %1042 = vmatprep.subr.mxu0 0.0
        %1043 = vmatpush1.msra.mxu0 0.0
        %1044 = vmatprep.subr.mxu0 0.0
        %1045 = vmatpush1.msra.mxu0 0.0
        %1046 = vmatprep.subr.mxu0 0.0
        %1047 = vmatpush1.msra.mxu0 0.0
        %1048 = vmatprep.subr.mxu0 0.0
        %1049 = vmatpush1.msra.mxu0 0.0
        %1050 = vmatprep.subr.mxu0 0.0
        %1051 = vmatpush1.msra.mxu0 0.0
        %1052 = vmatprep.subr.mxu0 0.0
        %1053 = vmatpush1.msra.mxu0 0.0
        %1054 = vmatprep.subr.mxu0 0.0
        %1055 = vmatpush1.msra.mxu0 0.0
        %1056 = vmatprep.subr.mxu0 0.0
        %1057 = vmatpush1.msra.mxu0 0.0
        %1058 = vmatprep.subr.mxu0 0.0
        %1059 = vmatpush1.msra.mxu0 0.0
        %1060 = vmatprep.subr.mxu0 0.0
        %1061 = vmatpush1.msra.mxu0 0.0
        %1062 = vmatprep.subr.mxu0 0.0
        %1063 = vmatpush1.msra.mxu0 0.0
        %1064 = vmatprep.subr.mxu0 0.0
        %1065 = vmatpush1.msra.mxu0 0.0
        %1066 = vmatprep.subr.mxu0 0.0
        %1067 = vmatpush1.msra.mxu0 0.0
        %1068 = vmatprep.subr.mxu0 0.0
        %1069 = vmatpush1.msra.mxu0 0.0
        %1070 = vmatprep.subr.mxu0 0.0
        %1071 = vmatpush1.msra.mxu0 0.0
        %1072 = vmatprep.subr.mxu0 0.0
        %1073 = vmatpush1.msra.mxu0 0.0
        %1074 = vmatprep.subr.mxu0 0.0
        %1075 = vmatpush1.msra.mxu0 0.0
        %1076 = vmatprep.subr.mxu0 0.0
        %1077 = vmatpush1.msra.mxu0 0.0
        %1078 = vmatprep.subr.mxu0 0.0
        %1079 = vmatpush1.msra.mxu0 0.0
        %1080 = vmatprep.subr.mxu0 0.0
        %1081 = vmatpush1.msra.mxu0 0.0
        %1082 = vmatprep.subr.mxu0 0.0
        %1083 = vmatpush1.msra.mxu0 0.0
        %1084 = vmatprep.subr.mxu0 0.0
        %1085 = vmatpush1.msra.mxu0 0.0
        %1086 = vmatprep.subr.mxu0 0.0
        %1087 = vmatpush1.msra.mxu0 0.0
        %1088 = vmatprep.subr.mxu0 0.0
        %1089 = vmatpush1.msra.mxu0 0.0
        %1090 = vmatprep.subr.mxu0 0.0
        %1091 = vmatpush1.msra.mxu0 0.0
        %1092 = vmatprep.subr.mxu0 0.0
        %1093 = vmatpush1.msra.mxu0 0.0
        %1094 = vmatprep.subr.mxu0 0.0
        %1095 = vmatpush1.msra.mxu0 0.0
        %1096 = vmatprep.subr.mxu0 0.0
        %1097 = vmatpush1.msra.mxu0 0.0
        %1098 = vmatprep.mubr.f32.mxu0 0.0
        %1099 = vmatmul.mubr.f32.gmra.mrb[0].mxu0 %v598
        %v1100 = vpop.f32.mrb[0].mxu0
        %v1101 = vadd.f32 %v579, %v1100
        %v1102 = vpop.f32.mrb[0].mxu0
        %1103 = vmatprep.mubr.f32.mxu0 0.0
        %1104 = vmatmul.mubr.f32.gmra.mrb[0].mxu0 %v601
        %v1105 = vpop.f32.mrb[0].mxu0
        %v1106 = vadd.f32 %v584, %v1105
        %v1107 = vpop.f32.mrb[0].mxu0
        %1108 = vmatprep.mubr.f32.mxu0 0.0
        %1109 = vmatmul.mubr.f32.gmra.mrb[0].mxu0 %v604
        %v1110 = vpop.f32.mrb[0].mxu0
        %v1111 = vadd.f32 %v589, %v1110
        %v1112 = vpop.f32.mrb[0].mxu0
        %1113 = vmatprep.mubr.f32.mxu0 0.0
        %1114 = vmatmul.mubr.f32.gmra.mrb[0].mxu0 %v607
        %v1115 = vpop.f32.mrb[0].mxu0
        %v1116 = vadd.f32 %v594, %v1115
        %v1117 = vpop.f32.mrb[0].mxu0
        %1118 = vdwg.mxu0
        %1119 = vmatprep.subr.mxu0 0.0
        %1120 = vmatpush1.msra.mxu0 %v568
        %1121 = vmatprep.subr.mxu0 0.0
        %1122 = vmatpush1.msra.mxu0 %v569
        %1123 = vmatprep.subr.mxu0 0.0
        %1124 = vmatpush1.msra.mxu0 %v570
        %1125 = vmatprep.subr.mxu0 0.0
        %1126 = vmatpush1.msra.mxu0 %v571
        %1127 = vmatprep.subr.mxu0 0.0
        %1128 = vmatpush1.msra.mxu0 0.0
        %1129 = vmatprep.subr.mxu0 0.0
        %1130 = vmatpush1.msra.mxu0 0.0
        %1131 = vmatprep.subr.mxu0 0.0
        %1132 = vmatpush1.msra.mxu0 0.0
        %1133 = vmatprep.subr.mxu0 0.0
        %1134 = vmatpush1.msra.mxu0 0.0
        %1135 = vmatprep.subr.mxu0 0.0
        %1136 = vmatpush1.msra.mxu0 0.0
        %1137 = vmatprep.subr.mxu0 0.0
        %1138 = vmatpush1.msra.mxu0 0.0
        %1139 = vmatprep.subr.mxu0 0.0
        %1140 = vmatpush1.msra.mxu0 0.0
        %1141 = vmatprep.subr.mxu0 0.0
        %1142 = vmatpush1.msra.mxu0 0.0
        %1143 = vmatprep.subr.mxu0 0.0
        %1144 = vmatpush1.msra.mxu0 0.0
        %1145 = vmatprep.subr.mxu0 0.0
        %1146 = vmatpush1.msra.mxu0 0.0
        %1147 = vmatprep.subr.mxu0 0.0
        %1148 = vmatpush1.msra.mxu0 0.0
        %1149 = vmatprep.subr.mxu0 0.0
        %1150 = vmatpush1.msra.mxu0 0.0
        %1151 = vmatprep.subr.mxu0 0.0
        %1152 = vmatpush1.msra.mxu0 0.0
        %1153 = vmatprep.subr.mxu0 0.0
        %1154 = vmatpush1.msra.mxu0 0.0
        %1155 = vmatprep.subr.mxu0 0.0
        %1156 = vmatpush1.msra.mxu0 0.0
        %1157 = vmatprep.subr.mxu0 0.0
        %1158 = vmatpush1.msra.mxu0 0.0
        %1159 = vmatprep.subr.mxu0 0.0
        %1160 = vmatpush1.msra.mxu0 0.0
        %1161 = vmatprep.subr.mxu0 0.0
        %1162 = vmatpush1.msra.mxu0 0.0
        %1163 = vmatprep.subr.mxu0 0.0
        %1164 = vmatpush1.msra.mxu0 0.0
        %1165 = vmatprep.subr.mxu0 0.0
        %1166 = vmatpush1.msra.mxu0 0.0
        %1167 = vmatprep.subr.mxu0 0.0
        %1168 = vmatpush1.msra.mxu0 0.0
        %1169 = vmatprep.subr.mxu0 0.0
        %1170 = vmatpush1.msra.mxu0 0.0
        %1171 = vmatprep.subr.mxu0 0.0
        %1172 = vmatpush1.msra.mxu0 0.0
        %1173 = vmatprep.subr.mxu0 0.0
        %1174 = vmatpush1.msra.mxu0 0.0
        %1175 = vmatprep.subr.mxu0 0.0
        %1176 = vmatpush1.msra.mxu0 0.0
        %1177 = vmatprep.subr.mxu0 0.0
        %1178 = vmatpush1.msra.mxu0 0.0
        %1179 = vmatprep.subr.mxu0 0.0
        %1180 = vmatpush1.msra.mxu0 0.0
        %1181 = vmatprep.subr.mxu0 0.0
        %1182 = vmatpush1.msra.mxu0 0.0
        %1183 = vmatprep.mubr.f32.mxu0 0.0
        %1184 = vmatmul.mubr.f32.gmra.mrb[0].mxu0 %v598
        %v1185 = vpop.f32.mrb[0].mxu0
        %v1186 = vadd.f32 %v579, %v1185
        %v1187 = vpop.f32.mrb[0].mxu0
        %1188 = vmatprep.mubr.f32.mxu0 0.0
        %1189 = vmatmul.mubr.f32.gmra.mrb[0].mxu0 %v601
        %v1190 = vpop.f32.mrb[0].mxu0
        %v1191 = vadd.f32 %v584, %v1190
        %v1192 = vpop.f32.mrb[0].mxu0
        %1193 = vmatprep.mubr.f32.mxu0 0.0
        %1194 = vmatmul.mubr.f32.gmra.mrb[0].mxu0 %v604
        %v1195 = vpop.f32.mrb[0].mxu0
        %v1196 = vadd.f32 %v589, %v1195
        %v1197 = vpop.f32.mrb[0].mxu0
        %1198 = vmatprep.mubr.f32.mxu0 0.0
        %1199 = vmatmul.mubr.f32.gmra.mrb[0].mxu0 %v607
        %v1200 = vpop.f32.mrb[0].mxu0
        %v1201 = vadd.f32 %v594, %v1200
        %v1202 = vpop.f32.mrb[0].mxu0
        %1203 = vdwg.mxu0
        %1204 = vmatprep.subr.mxu0 0.0
        %1205 = vmatpush1.msra.mxu0 %v572
        %1206 = vmatprep.subr.mxu0 0.0
        %1207 = vmatpush1.msra.mxu0 %v573
        %1208 = vmatprep.subr.mxu0 0.0
        %1209 = vmatpush1.msra.mxu0 %v574
        %1210 = vmatprep.subr.mxu0 0.0
        %1211 = vmatpush1.msra.mxu0 %v575
        %1212 = vmatprep.subr.mxu0 0.0
        %1213 = vmatpush1.msra.mxu0 0.0
        %1214 = vmatprep.subr.mxu0 0.0
        %1215 = vmatpush1.msra.mxu0 0.0
        %1216 = vmatprep.subr.mxu0 0.0
        %1217 = vmatpush1.msra.mxu0 0.0
        %1218 = vmatprep.subr.mxu0 0.0
        %1219 = vmatpush1.msra.mxu0 0.0
        %1220 = vmatprep.subr.mxu0 0.0
        %1221 = vmatpush1.msra.mxu0 0.0
        %1222 = vmatprep.subr.mxu0 0.0
        %1223 = vmatpush1.msra.mxu0 0.0
        %1224 = vmatprep.subr.mxu0 0.0
        %1225 = vmatpush1.msra.mxu0 0.0
        %1226 = vmatprep.subr.mxu0 0.0
        %1227 = vmatpush1.msra.mxu0 0.0
        %1228 = vmatprep.subr.mxu0 0.0
        %1229 = vmatpush1.msra.mxu0 0.0
        %1230 = vmatprep.subr.mxu0 0.0
        %1231 = vmatpush1.msra.mxu0 0.0
        %1232 = vmatprep.subr.mxu0 0.0
        %1233 = vmatpush1.msra.mxu0 0.0
        %1234 = vmatprep.subr.mxu0 0.0
        %1235 = vmatpush1.msra.mxu0 0.0
        %1236 = vmatprep.subr.mxu0 0.0
        %1237 = vmatpush1.msra.mxu0 0.0
        %1238 = vmatprep.subr.mxu0 0.0
        %1239 = vmatpush1.msra.mxu0 0.0
        %1240 = vmatprep.subr.mxu0 0.0
        %1241 = vmatpush1.msra.mxu0 0.0
        %1242 = vmatprep.subr.mxu0 0.0
        %1243 = vmatpush1.msra.mxu0 0.0
        %1244 = vmatprep.subr.mxu0 0.0
        %1245 = vmatpush1.msra.mxu0 0.0
        %1246 = vmatprep.subr.mxu0 0.0
        %1247 = vmatpush1.msra.mxu0 0.0
        %1248 = vmatprep.subr.mxu0 0.0
        %1249 = vmatpush1.msra.mxu0 0.0
        %1250 = vmatprep.subr.mxu0 0.0
        %1251 = vmatpush1.msra.mxu0 0.0
        %1252 = vmatprep.subr.mxu0 0.0
        %1253 = vmatpush1.msra.mxu0 0.0
        %1254 = vmatprep.subr.mxu0 0.0
        %1255 = vmatpush1.msra.mxu0 0.0
        %1256 = vmatprep.subr.mxu0 0.0
        %1257 = vmatpush1.msra.mxu0 0.0
        %1258 = vmatprep.subr.mxu0 0.0
        %1259 = vmatpush1.msra.mxu0 0.0
        %1260 = vmatprep.subr.mxu0 0.0
        %1261 = vmatpush1.msra.mxu0 0.0
        %1262 = vmatprep.subr.mxu0 0.0
        %1263 = vmatpush1.msra.mxu0 0.0
        %1264 = vmatprep.subr.mxu0 0.0
        %1265 = vmatpush1.msra.mxu0 0.0
        %1266 = vmatprep.subr.mxu0 0.0
        %1267 = vmatpush1.msra.mxu0 0.0
        %1268 = vmatprep.mubr.f32.mxu0 0.0
        %1269 = vmatmul.mubr.f32.gmra.mrb[0].mxu0 %v598
        %v1270 = vpop.f32.mrb[0].mxu0
        %v1271 = vadd.f32 %v579, %v1270
        %v1272 = vpop.f32.mrb[0].mxu0
        %1273 = vmatprep.mubr.f32.mxu0 0.0
        %1274 = vmatmul.mubr.f32.gmra.mrb[0].mxu0 %v601
        %v1275 = vpop.f32.mrb[0].mxu0
        %v1276 = vadd.f32 %v584, %v1275
        %v1277 = vpop.f32.mrb[0].mxu0
        %1278 = vmatprep.mubr.f32.mxu0 0.0
        %1279 = vmatmul.mubr.f32.gmra.mrb[0].mxu0 %v604
        %v1280 = vpop.f32.mrb[0].mxu0
        %v1281 = vadd.f32 %v589, %v1280
        %v1282 = vpop.f32.mrb[0].mxu0
        %1283 = vmatprep.mubr.f32.mxu0 0.0
        %1284 = vmatmul.mubr.f32.gmra.mrb[0].mxu0 %v607
        %v1285 = vpop.f32.mrb[0].mxu0
        %v1286 = vadd.f32 %v594, %v1285
        %v1287 = vpop.f32.mrb[0].mxu0
        %1288 = vdwg.mxu0
        %v1289 = vmax.f32 %v676, 0.0
        %v1290 = vmax.f32 %v681, 0.0
        %v1291 = vmax.f32 %v686, 0.0
        %v1292 = vmax.f32 %v691, 0.0
        %v1293 = vmax.f32 %v761, 0.0
        %v1294 = vmax.f32 %v766, 0.0
        %v1295 = vmax.f32 %v771, 0.0
        %v1296 = vmax.f32 %v776, 0.0
        %v1297 = vmax.f32 %v846, 0.0
        %v1298 = vmax.f32 %v851, 0.0
        %v1299 = vmax.f32 %v856, 0.0
        %v1300 = vmax.f32 %v861, 0.0
        %v1301 = vmax.f32 %v931, 0.0
        %v1302 = vmax.f32 %v936, 0.0
        %v1303 = vmax.f32 %v941, 0.0
        %v1304 = vmax.f32 %v946, 0.0
        %v1305 = vmax.f32 %v1016, 0.0
        %v1306 = vmax.f32 %v1021, 0.0
        %v1307 = vmax.f32 %v1026, 0.0
        %v1308 = vmax.f32 %v1031, 0.0
        %v1309 = vmax.f32 %v1101, 0.0
        %v1310 = vmax.f32 %v1106, 0.0
        %v1311 = vmax.f32 %v1111, 0.0
        %v1312 = vmax.f32 %v1116, 0.0
        %v1313 = vmax.f32 %v1186, 0.0
        %v1314 = vmax.f32 %v1191, 0.0
        %v1315 = vmax.f32 %v1196, 0.0
        %v1316 = vmax.f32 %v1201, 0.0
        %v1317 = vmax.f32 %v1271, 0.0
        %v1318 = vmax.f32 %v1276, 0.0
        %v1319 = vmax.f32 %v1281, 0.0
        %v1320 = vmax.f32 %v1286, 0.0
        %1322 = vset.pattern.permute.xlu0 0
        %1323 = vperm.xlu0 %1322, %v349
        %v1324 = vpop.permute.xlu0 %1323
        %1327 = vset.pattern.permute.xlu0 0
        %1328 = vperm.xlu0 %1327, %v350
        %v1329 = vpop.permute.xlu0 %1328
        %1332 = vset.pattern.permute.xlu0 0
        %1333 = vperm.xlu0 %1332, %v351
        %v1334 = vpop.permute.xlu0 %1333
        %1337 = vset.pattern.permute.xlu0 0
        %1338 = vperm.xlu0 %1337, %v352
        %v1339 = vpop.permute.xlu0 %1338
        %v1341 = vmul.f32 %v1289, %v1324
        %v1342 = vmul.f32 %v1290, %v1329
        %v1343 = vmul.f32 %v1291, %v1334
        %v1344 = vmul.f32 %v1292, %v1339
        %v1345 = vmul.f32 %v1293, %v1324
        %v1346 = vmul.f32 %v1294, %v1329
        %v1347 = vmul.f32 %v1295, %v1334
        %v1348 = vmul.f32 %v1296, %v1339
        %v1349 = vmul.f32 %v1297, %v1324
        %v1350 = vmul.f32 %v1298, %v1329
        %v1351 = vmul.f32 %v1299, %v1334
        %v1352 = vmul.f32 %v1300, %v1339
        %v1353 = vmul.f32 %v1301, %v1324
        %v1354 = vmul.f32 %v1302, %v1329
        %v1355 = vmul.f32 %v1303, %v1334
        %v1356 = vmul.f32 %v1304, %v1339
        %v1357 = vmul.f32 %v1305, %v1324
        %v1358 = vmul.f32 %v1306, %v1329
        %v1359 = vmul.f32 %v1307, %v1334
        %v1360 = vmul.f32 %v1308, %v1339
        %v1361 = vmul.f32 %v1309, %v1324
        %v1362 = vmul.f32 %v1310, %v1329
        %v1363 = vmul.f32 %v1311, %v1334
        %v1364 = vmul.f32 %v1312, %v1339
        %v1365 = vmul.f32 %v1313, %v1324
        %v1366 = vmul.f32 %v1314, %v1329
        %v1367 = vmul.f32 %v1315, %v1334
        %v1368 = vmul.f32 %v1316, %v1339
        %v1369 = vmul.f32 %v1317, %v1324
        %v1370 = vmul.f32 %v1318, %v1329
        %v1371 = vmul.f32 %v1319, %v1334
        %v1372 = vmul.f32 %v1320, %v1339
        %v1373 = vadd.f32 %v1341, %v1342
        %v1374 = vadd.f32 %v1373, %v1343
        %v1375 = vadd.f32 %v1374, %v1344
        %v1376 = vrot.slane %v1375, 4
        %v1377 = vadd.f32 %v1375, %v1376
        %v1378 = vrot.slane %v1377, 2
        %v1379 = vadd.f32 %v1377, %v1378
        %v1380 = vrot.slane %v1379, 1
        %v1381 = vadd.f32 %v1379, %v1380
        %v1382 = vadd.f32 %v1345, %v1346
        %v1383 = vadd.f32 %v1382, %v1347
        %v1384 = vadd.f32 %v1383, %v1348
        %v1385 = vrot.slane %v1384, 4
        %v1386 = vadd.f32 %v1384, %v1385
        %v1387 = vrot.slane %v1386, 2
        %v1388 = vadd.f32 %v1386, %v1387
        %v1389 = vrot.slane %v1388, 1
        %v1390 = vadd.f32 %v1388, %v1389
        %v1391 = vadd.f32 %v1349, %v1350
        %v1392 = vadd.f32 %v1391, %v1351
        %v1393 = vadd.f32 %v1392, %v1352
        %v1394 = vrot.slane %v1393, 4
        %v1395 = vadd.f32 %v1393, %v1394
        %v1396 = vrot.slane %v1395, 2
        %v1397 = vadd.f32 %v1395, %v1396
        %v1398 = vrot.slane %v1397, 1
        %v1399 = vadd.f32 %v1397, %v1398
        %v1400 = vadd.f32 %v1353, %v1354
        %v1401 = vadd.f32 %v1400, %v1355
        %v1402 = vadd.f32 %v1401, %v1356
        %v1403 = vrot.slane %v1402, 4
        %v1404 = vadd.f32 %v1402, %v1403
        %v1405 = vrot.slane %v1404, 2
        %v1406 = vadd.f32 %v1404, %v1405
        %v1407 = vrot.slane %v1406, 1
        %v1408 = vadd.f32 %v1406, %v1407
        %v1409 = vadd.f32 %v1357, %v1358
        %v1410 = vadd.f32 %v1409, %v1359
        %v1411 = vadd.f32 %v1410, %v1360
        %v1412 = vrot.slane %v1411, 4
        %v1413 = vadd.f32 %v1411, %v1412
        %v1414 = vrot.slane %v1413, 2
        %v1415 = vadd.f32 %v1413, %v1414
        %v1416 = vrot.slane %v1415, 1
        %v1417 = vadd.f32 %v1415, %v1416
        %v1418 = vadd.f32 %v1361, %v1362
        %v1419 = vadd.f32 %v1418, %v1363
        %v1420 = vadd.f32 %v1419, %v1364
        %v1421 = vrot.slane %v1420, 4
        %v1422 = vadd.f32 %v1420, %v1421
        %v1423 = vrot.slane %v1422, 2
        %v1424 = vadd.f32 %v1422, %v1423
        %v1425 = vrot.slane %v1424, 1
        %v1426 = vadd.f32 %v1424, %v1425
        %v1427 = vadd.f32 %v1365, %v1366
        %v1428 = vadd.f32 %v1427, %v1367
        %v1429 = vadd.f32 %v1428, %v1368
        %v1430 = vrot.slane %v1429, 4
        %v1431 = vadd.f32 %v1429, %v1430
        %v1432 = vrot.slane %v1431, 2
        %v1433 = vadd.f32 %v1431, %v1432
        %v1434 = vrot.slane %v1433, 1
        %v1435 = vadd.f32 %v1433, %v1434
        %v1436 = vadd.f32 %v1369, %v1370
        %v1437 = vadd.f32 %v1436, %v1371
        %v1438 = vadd.f32 %v1437, %v1372
        %v1439 = vrot.slane %v1438, 4
        %v1440 = vadd.f32 %v1438, %v1439
        %v1441 = vrot.slane %v1440, 2
        %v1442 = vadd.f32 %v1440, %v1441
        %v1443 = vrot.slane %v1442, 1
        %v1444 = vadd.f32 %v1442, %v1443
        %v1445 = vstv %s354
        %v1446 = vadd.f32 %v1381, %v1445
        %v1447 = vadd.f32 %v1390, %v1445
        %v1448 = vadd.f32 %v1399, %v1445
        %v1449 = vadd.f32 %v1408, %v1445
        %v1450 = vadd.f32 %v1417, %v1445
        %v1451 = vadd.f32 %v1426, %v1445
        %v1452 = vadd.f32 %v1435, %v1445
        %v1453 = vadd.f32 %v1444, %v1445
        %vm1462 = vcmask 1041409
        %v1463 = vsel %vm1462, %v1447, %v1446
        %vm1464 = vcmask 1042434
        %v1465 = vsel %vm1464, %v1448, %v1463
        %vm1466 = vcmask 1043459
        %v1467 = vsel %vm1466, %v1449, %v1465
        %vm1468 = vcmask 1044484
        %v1469 = vsel %vm1468, %v1450, %v1467
        %vm1470 = vcmask 1045509
        %v1471 = vsel %vm1470, %v1451, %v1469
        %vm1472 = vcmask 1046534
        %v1473 = vsel %vm1472, %v1452, %v1471
        %vm1474 = vcmask 1047559
        %v1475 = vsel %vm1474, %v1453, %v1473
        %1477 = vst [vmem:[%s332] sm:$0xff] %v1475
        %s1478 = sand.u32 %s197, 1
        %s1479 = scalar_lea.sflag [#allocation5], %s1478
        %s1480 = sand.u32 %s197, 1
        %s1481 = smul.addr %s1480, 8
        %s1482 = scalar_lea.vmem [#allocation8], %s1481
        // Predicated region
        $region53: #{tpu_custom_call.1} parent=43 // pred_check
          %p1483 = pneg %p207
        $region54: #{tpu_custom_call.1} parent=43 // pred_check_branch
          %1485 = sbr.rel (%p1483) target = $region56
        $region55: #{tpu_custom_call.1} parent=43 // pred_region
          %s1487 = ssub.s32 128, 128
          %1488 = vsyncadd %s1479, %s1487
          %s1489 = sadd.s32 %s33, %s32
          %s1490 = sadd.s32 %s1489, %s31
          %s1491 = smul.addr %s1490, 128
          %s1492 = scalar_lea.hbm %s6, %s1491
          %s1494 = sshll.u32 %s1482, 4
          %s1495 = int_to_ptr.vmem [resolvable:$true] %s1494
          %1497 = dma.vmem_to_hbm [thread:$0]  %s1495, 128, %s1492, %s1479
        $region56: #{tpu_custom_call.1} parent=43 // pred_fallthru
          _
      $region44: #{tpu_custom_call.1} parent=5 // pred_fallthru
        _
      %p1498 = scmp.le.s32.totalorder 2, %s21
      // Predicated region
      $region57: #{tpu_custom_call.1} parent=5 // pred_check
        %p1499 = pneg %p1498
      $region58: #{tpu_custom_call.1} parent=5 // pred_check_branch
        %1501 = sbr.rel (%p1499) target = $region60
      $region59: #{tpu_custom_call.1} parent=5 // pred_region
        %s1502 = ssub.s32 %s21, 2
        // Predicated region
        $region61: #{tpu_custom_call.1} parent=59 // pred_check
          %p1503 = pneg %p213
        $region62: #{tpu_custom_call.1} parent=59 // pred_check_branch
          %1505 = sbr.rel (%p1503) target = $region64
        $region63: #{tpu_custom_call.1} parent=59 // pred_region
          %s1506 = sand.u32 %s198, 1
          %s1507 = scalar_lea.sflag [#allocation5], %s1506
          %s1508 = sand.u32 %s198, 1
          %s1509 = smul.addr %s1508, 8
          %s1510 = scalar_lea.vmem [#allocation8], %s1509
          %1511 = dma.done %s1507, 128
        $region64: #{tpu_custom_call.1} parent=59 // pred_fallthru
          _
      $region60: #{tpu_custom_call.1} parent=5 // pred_fallthru
        _
    $region6: #{tpu_custom_call.1} parent=1 // loop_footer
      %s25 = sadd.s32 1, %s21
    $region7: #{tpu_custom_call.1} parent=1 // loop_footer_branch
      %20 = sbr.rel target = $region3
    $region8: #{tpu_custom_call.1} parent=1 // loop_exit
      _
    %1512 = vsyncpa [#allocation4], 1
    %s1513 = scalar_lea.sflag [#allocation4], 1
    %1514 = vsyncpa %s1513, 1
    %1515 = vsyncpa [#allocation7], 1
    %1516 = vsyncpa [#allocation5], 1
    %s1517 = scalar_lea.sflag [#allocation5], 1
    %1518 = vsyncpa %s1517, 1

</llo_original>
